<compile_context>
chip_gen: v7x
topology: tpu7x:2x2x1
jax: 0.10.0
libtpu: 0.0.40
codegen_flags: <defaults>
</compile_context>

<pallas_src>
import jax
import jax.numpy as jnp
from jax.experimental import pallas as pl
from jax.experimental.pallas import tpu as pltpu


def _hsic_kernel(gamma_ref, x_ref, lab_ref, o_ref):
    # gamma_ref: (1,)          f32 SMEM   scalar-prefetched 1/(2*sigma^2)
    # x_ref:     (BB, N, D)    f32 VMEM   samples for BB batch elements
    # lab_ref:   (BB, 1, N)    i32 VMEM   class labels (lane-dense row)
    # o_ref:     (1, BB, 128)  f32 VMEM   per-batch scalar broadcast over lanes
    gamma = gamma_ref[0]
    X = x_ref[...]                                    # (BB, N, D)
    BB = X.shape[0]

    # Batched Gram on the MXU; contracting the last dim of both operands means
    # no transposed copy of X is ever materialized.
    gram = jnp.einsum("bnd,bmd->bnm", X, X,
                      preferred_element_type=jnp.float32)        # (BB, N, N)
    sq = jnp.sum(X * X, axis=2, keepdims=True)                   # (BB, N, 1)

    # Gaussian kernel with the gamma scale fused; min(., 0) clamps tiny
    # positive cancellation error (same role as a max(sqd, 0) guard).
    sqd = 2.0 * gram - sq - jnp.swapaxes(sq, 1, 2)               # -||xi-xj||^2
    K = jnp.exp(jnp.minimum(gamma * sqd, 0.0))                   # (BB, N, N)

    # Label kernel: for one-hot Yo, Yo @ Yo.T == (label_i == label_j)  (VPU).
    lab_row = lab_ref[...]                                       # (BB, 1, N)
    lab_col = jnp.swapaxes(lab_row, 1, 2)                        # (BB, N, 1)
    Kg = (lab_col == lab_row).astype(jnp.float32)                # (BB, N, N)

    # Centering exactly as the reference: HKg = Kg - colmean(Kg).
    # K is symmetric, so HKx.T == K - rowmean(K): no (N,N) transpose needed.
    HKg = Kg - jnp.mean(Kg, axis=1, keepdims=True)               # (BB, N, N)
    HKxT = K - jnp.mean(K, axis=2, keepdims=True)                # (BB, N, N)

    hxg = jnp.sum(jnp.sum(HKxT * HKg, axis=2), axis=1, keepdims=True)  # (BB, 1)
    o_ref[0] = jnp.broadcast_to(-hxg, (BB, 128))


def hsic_batched(X, labels, sigma, block_b=None):
    """Batched hsic_net.forward.

    X:      (B, N, D) float
    labels: (B, N)    integer class labels (Yo one-hot <=> label equality)
    sigma:  scalar    the module's sigma parameter
    Returns (B,) float32 of -HSIC values, one per batch element.
    """
    X = X.astype(jnp.float32)
    B, N, D = X.shape
    labels = labels.astype(jnp.int32)

    if block_b is None:
        # Amortize the ~0.35 us fixed grid-step cost over many batch elements,
        # but keep >= 2 grid steps (marked "parallel") whenever B >= 2 so both
        # v7x TensorCores get work.  On v5e/v6e extra steps are near-free.
        block_b = max(1, min(8, (B + 1) // 2))
    num_blocks = pl.cdiv(B, block_b)
    Bp = num_blocks * block_b
    if Bp != B:
        X = jnp.pad(X, ((0, Bp - B), (0, 0), (0, 0)))
        labels = jnp.pad(labels, ((0, Bp - B), (0, 0)))

    lab_row = labels.reshape(Bp, 1, N)

    # Precompute gamma in the wrapper (removes a per-step divide; sigma == 0
    # still yields inf, matching the PyTorch original's hazard).
    gamma = jnp.reshape(1.0 / (2.0 * jnp.asarray(sigma, jnp.float32) ** 2), (1,))

    out = pl.pallas_call(
        _hsic_kernel,
        out_shape=jax.ShapeDtypeStruct((num_blocks, block_b, 128), jnp.float32),
        grid_spec=pltpu.PrefetchScalarGridSpec(
            num_scalar_prefetch=1,                 # gamma -> SMEM for the whole grid
            grid=(num_blocks,),
            in_specs=[
                pl.BlockSpec((block_b, N, D), lambda b, g: (b, 0, 0)),  # X block
                pl.BlockSpec((block_b, 1, N), lambda b, g: (b, 0, 0)),  # label row
            ],
            out_specs=pl.BlockSpec((1, block_b, 128), lambda b, g: (b, 0, 0)),
        ),
        compiler_params=pltpu.CompilerParams(
            dimension_semantics=("parallel",),     # shard blocks across TCs on v7x
            vmem_limit_bytes=32 * 1024 * 1024,     # only matters vs v5e's 16 MiB default
        ),
    )(gamma, X, lab_row)
    return out[:, :, 0].reshape(-1)[:B]


def hsic_forward(X, Yo, sigma):
    """Single-call hsic_net.forward(X, Yo).

    Yo is assumed one-hot (the hsic_net usage), so Yo @ Yo.T reduces to a
    label-equality mask computed on the VPU inside the kernel.
    """
    labels = jnp.argmax(Yo, axis=-1).astype(jnp.int32)
    return hsic_batched(X[None], labels[None], sigma)[0]


def init_sigma(X):
    """Deterministic parameter init: sigma = median of pairwise distances of X
    (mirrors sklearn.metrics.pairwise.pairwise_distances + np.median in __init__)."""
    diffs = X[:, None, :] - X[None, :, :]
    dists = jnp.sqrt(jnp.sum(diffs * diffs, axis=-1))
    return jnp.median(dists)


def _reference(X, Yo, sigma):
    """Pure-JAX reference mirroring the PyTorch forward (for sanity checking)."""
    gamma = 1.0 / (2.0 * sigma * sigma)
    diffs = X[:, None, :] - X[None, :, :]
    K = jnp.exp(gamma * -(jnp.linalg.norm(diffs, axis=2) ** 2))
    Kg = Yo @ Yo.T
    HKg = Kg - jnp.mean(Kg, axis=0)
    HKx = K - jnp.mean(K, axis=0)
    return -jnp.sum(HKx.T * HKg)


if __name__ == "__main__":
    key = jax.random.PRNGKey(0)
    kx, ky = jax.random.split(key)

    B, N, D, C = 8, 32, 16, 4
    X = jax.random.normal(kx, (B, N, D), dtype=jnp.float32)
    labels = jax.random.randint(ky, (B, N), 0, C)
    Yo = jax.nn.one_hot(labels, C, dtype=jnp.float32)               # (B, N, C)

    sigma = init_sigma(X[0])                                        # hsic_net.__init__

    # Batch-blocked kernel: 2 grid steps of 4 batch elements each.
    out = jax.block_until_ready(hsic_batched(X, labels, sigma))

    ref = jax.vmap(lambda x, yo: _reference(x, yo, sigma))(X, Yo)
    assert jnp.allclose(out, ref, rtol=1e-4, atol=1e-4), (out, ref)

    # Single-call path matching the module signature forward(X, Yo).
    single = jax.block_until_ready(hsic_forward(X[0], Yo[0], sigma))
    assert jnp.allclose(single, ref[0], rtol=1e-4, atol=1e-4), (single, ref[0])

    print("KERNEL_OK")
</pallas_src>

<mosaic_0001>
module attributes {stable_mosaic.version = 11 : i64} {
  func.func @_hsic_kernel(%arg0: i32, %arg1: memref<1xf32, #tpu.memory_space<smem>>, %arg2: memref<4x32x16xf32, #tpu.memory_space<vmem>>, %arg3: memref<4x1x32xi32, #tpu.memory_space<vmem>>, %arg4: memref<1x4x128xf32, #tpu.memory_space<vmem>>) attributes {dimension_semantics = [#tpu.dimension_semantics<parallel>], iteration_bounds = array<i64: 2>, scalar_prefetch = 1 : i64, scratch_operands = 0 : i64, tpu.core_type = #tpu.core_type<tc>, window_params = [{transform_indices = @transform_0, window_bounds = array<i64: 4, 32, 16>}, {transform_indices = @transform_1, window_bounds = array<i64: 4, 1, 32>}, {transform_indices = @transform_2, window_bounds = array<i64: 1, 4, 128>}]} {
    %c0 = arith.constant 0 : index
    %0 = memref.load %arg1[%c0] : memref<1xf32, #tpu.memory_space<smem>>
    %c0_0 = arith.constant 0 : index
    %c0_1 = arith.constant 0 : index
    %c0_2 = arith.constant 0 : index
    %1 = vector.load %arg2[%c0_0, %c0_1, %c0_2] : memref<4x32x16xf32, #tpu.memory_space<vmem>>, vector<4x32x16xf32>
    "tpu.trace_start"() <{level = 10 : i32, message = "bnd,bmd->bnm"}> : () -> ()
    %cst = arith.constant dense<0.000000e+00> : vector<4x32x32xf32>
    %2 = tpu.matmul %1, %1, %cst {dimension_numbers = #tpu.dot_dimension_numbers<[2], [2], [1], [1], [0, 0, 0, 1, 1, 1], [0], [0]>} : vector<4x32x16xf32>, vector<4x32x16xf32>, vector<4x32x32xf32> -> vector<4x32x32xf32>
    "tpu.trace_stop"() : () -> ()
    %3 = arith.mulf %1, %1 : vector<4x32x16xf32>
    %cst_3 = arith.constant dense<0.000000e+00> : vector<4x32xf32>
    %4 = vector.multi_reduction <add>, %3, %cst_3 [2] : vector<4x32x16xf32> to vector<4x32xf32>
    %5 = vector.shape_cast %4 : vector<4x32xf32> to vector<4x32x1xf32>
    %cst_4 = arith.constant 2.000000e+00 : f32
    %6 = vector.broadcast %cst_4 : f32 to vector<4x32x32xf32>
    %7 = arith.mulf %6, %2 : vector<4x32x32xf32>
    %8 = vector.broadcast %5 : vector<4x32x1xf32> to vector<4x32x32xf32>
    %9 = arith.subf %7, %8 : vector<4x32x32xf32>
    %10 = tpu.transpose %5, [0, 2, 1] : vector<4x32x1xf32> -> vector<4x1x32xf32>
    %11 = vector.broadcast %10 : vector<4x1x32xf32> to vector<4x32x32xf32>
    %12 = arith.subf %9, %11 : vector<4x32x32xf32>
    %13 = vector.broadcast %0 : f32 to vector<4x32x32xf32>
    %14 = arith.mulf %13, %12 : vector<4x32x32xf32>
    %cst_5 = arith.constant 0.000000e+00 : f32
    %15 = vector.broadcast %cst_5 : f32 to vector<4x32x32xf32>
    %16 = arith.minimumf %14, %15 : vector<4x32x32xf32>
    %17 = math.exp %16 : vector<4x32x32xf32>
    %c0_6 = arith.constant 0 : index
    %c0_7 = arith.constant 0 : index
    %c0_8 = arith.constant 0 : index
    %18 = vector.load %arg3[%c0_6, %c0_7, %c0_8] : memref<4x1x32xi32, #tpu.memory_space<vmem>>, vector<4x1x32xi32>
    %19 = tpu.transpose %18, [0, 2, 1] : vector<4x1x32xi32> -> vector<4x32x1xi32>
    %20 = vector.broadcast %19 : vector<4x32x1xi32> to vector<4x32x32xi32>
    %21 = vector.broadcast %18 : vector<4x1x32xi32> to vector<4x32x32xi32>
    %22 = arith.cmpi eq, %20, %21 : vector<4x32x32xi32>
    %23 = arith.extui %22 : vector<4x32x32xi1> to vector<4x32x32xi32>
    %24 = arith.sitofp %23 : vector<4x32x32xi32> to vector<4x32x32xf32>
    %cst_9 = arith.constant dense<0.000000e+00> : vector<4x32xf32>
    %25 = vector.multi_reduction <add>, %24, %cst_9 [1] : vector<4x32x32xf32> to vector<4x32xf32>
    %26 = vector.shape_cast %25 : vector<4x32xf32> to vector<4x1x32xf32>
    %cst_10 = arith.constant 3.200000e+01 : f32
    %27 = vector.broadcast %cst_10 : f32 to vector<4x1x32xf32>
    %28 = arith.divf %26, %27 : vector<4x1x32xf32>
    %29 = vector.broadcast %28 : vector<4x1x32xf32> to vector<4x32x32xf32>
    %30 = arith.subf %24, %29 : vector<4x32x32xf32>
    %cst_11 = arith.constant dense<0.000000e+00> : vector<4x32xf32>
    %31 = vector.multi_reduction <add>, %17, %cst_11 [2] : vector<4x32x32xf32> to vector<4x32xf32>
    %32 = vector.shape_cast %31 : vector<4x32xf32> to vector<4x32x1xf32>
    %cst_12 = arith.constant 3.200000e+01 : f32
    %33 = vector.broadcast %cst_12 : f32 to vector<4x32x1xf32>
    %34 = arith.divf %32, %33 : vector<4x32x1xf32>
    %35 = vector.broadcast %34 : vector<4x32x1xf32> to vector<4x32x32xf32>
    %36 = arith.subf %17, %35 : vector<4x32x32xf32>
    %37 = arith.mulf %36, %30 : vector<4x32x32xf32>
    %cst_13 = arith.constant dense<0.000000e+00> : vector<4x32xf32>
    %38 = vector.multi_reduction <add>, %37, %cst_13 [2] : vector<4x32x32xf32> to vector<4x32xf32>
    %cst_14 = arith.constant dense<0.000000e+00> : vector<4xf32>
    %39 = vector.multi_reduction <add>, %38, %cst_14 [1] : vector<4x32xf32> to vector<4xf32>
    %40 = vector.shape_cast %39 : vector<4xf32> to vector<4x1xf32>
    %cst_15 = arith.constant 0.000000e+00 : f32
    %41 = vector.broadcast %cst_15 : f32 to vector<4x1xf32>
    %42 = arith.subf %41, %40 : vector<4x1xf32>
    %43 = vector.shape_cast %42 : vector<4x1xf32> to vector<4x1xf32>
    %44 = vector.broadcast %43 : vector<4x1xf32> to vector<4x128xf32>
    %c0_16 = arith.constant 0 : index
    %c0_17 = arith.constant 0 : index
    %c0_18 = arith.constant 0 : index
    %45 = vector.load %arg4[%c0_16, %c0_17, %c0_18] : memref<1x4x128xf32, #tpu.memory_space<vmem>>, vector<1x4x128xf32>
    %46 = vector.shape_cast %45 : vector<1x4x128xf32> to vector<4x128xf32>
    %47 = vector.shape_cast %44 : vector<4x128xf32> to vector<1x4x128xf32>
    tpu.vector_store %arg4[%c0_16, %c0_17, %c0_18], %47 {strides = array<i32>} : memref<1x4x128xf32, #tpu.memory_space<vmem>>, vector<1x4x128xf32>,
    return
  }
  func.func @transform_0(%arg0: i32, %arg1: memref<1xf32, #tpu.memory_space<smem>>) -> (i32, i32, i32) {
    %c0_i32 = arith.constant 0 : i32
    %c0_i32_0 = arith.constant 0 : i32
    %c0_i32_1 = arith.constant 0 : i32
    return %arg0, %c0_i32, %c0_i32_0 : i32, i32, i32
  }
  func.func @transform_1(%arg0: i32, %arg1: memref<1xf32, #tpu.memory_space<smem>>) -> (i32, i32, i32) {
    %c0_i32 = arith.constant 0 : i32
    %c0_i32_0 = arith.constant 0 : i32
    %c0_i32_1 = arith.constant 0 : i32
    return %arg0, %c0_i32, %c0_i32_0 : i32, i32, i32
  }
  func.func @transform_2(%arg0: i32, %arg1: memref<1xf32, #tpu.memory_space<smem>>) -> (i32, i32, i32) {
    %c0_i32 = arith.constant 0 : i32
    %c0_i32_0 = arith.constant 0 : i32
    %c0_i32_1 = arith.constant 0 : i32
    return %arg0, %c0_i32, %c0_i32_0 : i32, i32, i32
  }
}

</mosaic_0001>

<llo_original>
// kernel: tpu_custom_call.1
$region0: #{tpu_custom_call.1}
  #allocation0 [shape = 'u32[]', space=smem, size = 0x4, offset = 0x4, fixed_abs, tag = 'smem constant byte address 0x4 - core index']
  #allocation1 [shape = 'u32[144,128]{1,0:T(1,128)}', space=vmem, size = 0x12000, scoped, tag = 'internal scratch']
  #allocation2 [shape = 's32[1]{0}', space=sflag, size = 0x4, scoped, tag = 'scoped memory for tpu_custom_call.1']
  #allocation3 [shape = 'f32[1]{0:T(128)S(6)}', space=smem, size = 0x200, scoped, tag = 'prefetched SMEM operand 0']
  %s0 = inlined_call_operand.<no memory space> [shape: f32[1], index: 0, kind: input, shape index: {}]
  %s1 = inlined_call_operand.vmem [shape: f32[8,32,16], index: 1, kind: input, shape index: {}]
  %s2 = inlined_call_operand.vmem [shape: s32[8,1,32], index: 2, kind: input, shape index: {}]
  %s3 = inlined_call_operand.hbm [shape: f32[2,4,128], index: 3, kind: output, shape index: {}]
  %s4 = sld [smem:[#allocation0]]
  $region41: #{tpu_custom_call.1} parent=0
    _
  %s6 = ssub.s32 1, %s4
  %s7 = scalar_select 0, %s6, %s4
  %8 = sst [smem:[#allocation3]] %s0
  $region1: #{tpu_custom_call.1} parent=0
    #allocation4 [shape = 'u8[4096]{0}', space=vmem, size = 0x1000, scoped, tag = 'output window, operand 0']
    #allocation5 [shape = 's32[2]{0}', space=sflag, size = 0x8, scoped, tag = 'scoped memory for tpu_custom_call.1']
    %9 = vsyncpa [#allocation5], 0
    %s10 = scalar_lea.sflag [#allocation5], 1
    %11 = vsyncpa %s10, 0
    loop: start=0, step=1, limit=4
    $region2: #{tpu_custom_call.1} parent=1 // loop_pre_header
      _
    $region3: #{tpu_custom_call.1} parent=1 // loop_header
      %s13 = sphi 0, %s17
      %p14 = scmp.ge.s32.totalorder %s13, 4
      %s23 = sphi 0, %s25
      %s26 = sphi 0, %s23
      %s27 = sphi 0, %s26
      %s43 = sphi 0, %s27
      %s49 = sphi 0, %s51
      %s52 = sphi 0, %s49
      %s53 = sphi 0, %s52
      %s69 = sphi 0, %s53
      %s75 = sphi 0, %s77
      %s78 = sphi 0, %s75
      %s79 = sphi 0, %s78
      %s95 = sphi 0, %s79
    $region4: #{tpu_custom_call.1} parent=1 // loop_header_branch
      %16 = sbr.rel (%p14) target = $region8
    $region5: #{tpu_custom_call.1} parent=1 // loop_body
      %s18 = ssub.s32 %s13, 1
      %s19 = ssub.s32 %s13, 2
      %s20 = sadd.s32 %s13, 1
      %s21 = ssub.s32 %s13, %s20
      %p22 = scmp.eq.s32.totalorder %s21, 0
      %s24 = sadd.s32 %s23, 1
      %s25 = scalar_select %p22, %s23, %s24
      %p28 = pneg %p22
      %p29 = scmp.eq.s32.totalorder %s13, 1
      %p30 = por %p28, %p29
      %p31 = scmp.ne.s32.totalorder %s23, %s26
      %p32 = scmp.eq.s32.totalorder %s13, 0
      %p33 = por %p31, %p32
      %p34 = scmp.ne.s32.totalorder %s23, %s26
      %p35 = scmp.eq.s32.totalorder %s18, 1
      %p36 = por %p34, %p35
      %p37 = scmp.ne.s32.totalorder %s26, %s27
      %p38 = scmp.eq.s32.totalorder %s18, 0
      %p39 = por %p37, %p38
      %p40 = scmp.ne.s32.totalorder %s26, %s27
      %p41 = scmp.eq.s32.totalorder %s19, 1
      %p42 = por %p40, %p41
      %p44 = scmp.ne.s32.totalorder %s27, %s43
      %p45 = scmp.eq.s32.totalorder %s19, 0
      %p46 = por %p44, %p45
      %s47 = ssub.s32 %s13, %s20
      %p48 = scmp.eq.s32.totalorder %s47, 0
      %s50 = sadd.s32 %s49, 1
      %s51 = scalar_select %p48, %s49, %s50
      %p54 = pneg %p48
      %p55 = scmp.eq.s32.totalorder %s13, 1
      %p56 = por %p54, %p55
      %p57 = scmp.ne.s32.totalorder %s49, %s52
      %p58 = scmp.eq.s32.totalorder %s13, 0
      %p59 = por %p57, %p58
      %p60 = scmp.ne.s32.totalorder %s49, %s52
      %p61 = scmp.eq.s32.totalorder %s18, 1
      %p62 = por %p60, %p61
      %p63 = scmp.ne.s32.totalorder %s52, %s53
      %p64 = scmp.eq.s32.totalorder %s18, 0
      %p65 = por %p63, %p64
      %p66 = scmp.ne.s32.totalorder %s52, %s53
      %p67 = scmp.eq.s32.totalorder %s19, 1
      %p68 = por %p66, %p67
      %p70 = scmp.ne.s32.totalorder %s53, %s69
      %p71 = scmp.eq.s32.totalorder %s19, 0
      %p72 = por %p70, %p71
      %s73 = ssub.s32 %s13, %s20
      %p74 = scmp.eq.s32.totalorder %s73, 0
      %s76 = sadd.s32 %s75, 1
      %s77 = scalar_select %p74, %s75, %s76
      %p80 = pneg %p74
      %p81 = scmp.eq.s32.totalorder %s13, 1
      %p82 = por %p80, %p81
      %p83 = scmp.ne.s32.totalorder %s75, %s78
      %p84 = scmp.eq.s32.totalorder %s13, 0
      %p85 = por %p83, %p84
      %p86 = scmp.ne.s32.totalorder %s75, %s78
      %p87 = scmp.eq.s32.totalorder %s18, 1
      %p88 = por %p86, %p87
      %p89 = scmp.ne.s32.totalorder %s78, %s79
      %p90 = scmp.eq.s32.totalorder %s18, 0
      %p91 = por %p89, %p90
      %p92 = scmp.ne.s32.totalorder %s78, %s79
      %p93 = scmp.eq.s32.totalorder %s19, 1
      %p94 = por %p92, %p93
      %p96 = scmp.ne.s32.totalorder %s79, %s95
      %p97 = scmp.eq.s32.totalorder %s19, 0
      %p98 = por %p96, %p97
      %p99 = scmp.le.s32.totalorder 1, %s13
      %p100 = scmp.lt.s32.totalorder %s13, 3
      %p101 = pnand %p99, %p100
      %p102 = pneg %p101
      // Predicated region
      $region9: #{tpu_custom_call.1} parent=5 // pred_check
        _
      $region10: #{tpu_custom_call.1} parent=5 // pred_check_branch
        %104 = sbr.rel (%p101) target = $region12
      $region11: #{tpu_custom_call.1} parent=5 // pred_region
        %s105 = ssub.s32 %s13, 1
      $region12: #{tpu_custom_call.1} parent=5 // pred_fallthru
        _
      %p106 = scmp.lt.s32.totalorder %s13, 2
      // Predicated region
      $region13: #{tpu_custom_call.1} parent=5 // pred_check
        %p107 = pneg %p106
      $region14: #{tpu_custom_call.1} parent=5 // pred_check_branch
        %109 = sbr.rel (%p107) target = $region16
      $region15: #{tpu_custom_call.1} parent=5 // pred_region
        // Predicated region
        $region17: #{tpu_custom_call.1} parent=15 // pred_check
          %p110 = pneg %p33
        $region18: #{tpu_custom_call.1} parent=15 // pred_check_branch
          %112 = sbr.rel (%p110) target = $region20
        $region19: #{tpu_custom_call.1} parent=15 // pred_region
          %s113 = smul.u32 4, %s13
          %p114 = scmp.lt.s32.totalorder %s113, 7
          %s115 = scalar_select %p114, %s113, 7
          %s116 = smul.addr %s115, 4
          %s117 = smul.addr %s116, 8
          %s118 = scalar_lea.vmem %s1, %s117
          %s119 = smul.u32 4, %s13
        $region20: #{tpu_custom_call.1} parent=15 // pred_fallthru
          _
        // Predicated region
        $region21: #{tpu_custom_call.1} parent=15 // pred_check
          %p120 = pneg %p59
        $region22: #{tpu_custom_call.1} parent=15 // pred_check_branch
          %122 = sbr.rel (%p120) target = $region24
        $region23: #{tpu_custom_call.1} parent=15 // pred_region
          %s123 = smul.u32 4, %s13
          %p124 = scmp.lt.s32.totalorder %s123, 7
          %s125 = scalar_select %p124, %s123, 7
          %s126 = scalar_lea.vmem %s2, %s125
          %s127 = smul.u32 4, %s13
        $region24: #{tpu_custom_call.1} parent=15 // pred_fallthru
          _
      $region16: #{tpu_custom_call.1} parent=5 // pred_fallthru
        _
      %p128 = scmp.le.s32.totalorder 1, %s13
      %p129 = scmp.lt.s32.totalorder %s13, 3
      %p130 = pnand %p128, %p129
      %p131 = pneg %p130
      // Predicated region
      $region25: #{tpu_custom_call.1} parent=5 // pred_check
        _
      $region26: #{tpu_custom_call.1} parent=5 // pred_check_branch
        %133 = sbr.rel (%p130) target = $region28
      $region27: #{tpu_custom_call.1} parent=5 // pred_region
        %s134 = ssub.s32 %s13, 1
        %s135 = smul.u32 4, %s18
        %p136 = scmp.lt.s32.totalorder %s135, 7
        %s137 = scalar_select %p136, %s135, 7
        %s138 = smul.addr %s137, 4
        %s139 = smul.addr %s138, 8
        %s140 = scalar_lea.vmem %s1, %s139
        %p141 = pneg %p39
        %p142 = pneg %p36
        %s143 = smul.u32 4, %s18
        %p144 = scmp.lt.s32.totalorder %s143, 7
        %s145 = scalar_select %p144, %s143, 7
        %s146 = scalar_lea.vmem %s2, %s145
        %p147 = pneg %p65
        %p148 = pneg %p62
        %p149 = pneg %p91
        %p150 = pneg %p88
        %s151 = sand.u32 %s78, 1
        %s152 = scalar_lea.sflag [#allocation5], %s151
        %s153 = sand.u32 %s78, 1
        %s154 = smul.addr %s153, 4
        %s155 = scalar_lea.vmem [#allocation4], %s154
        %s156 = smul.u32 4, %s18
        %p157 = scmp.lt.s32.totalorder %s156, 7
        %s158 = scalar_select %p157, %s156, 7
        %s159 = smul.addr %s158, 4
        %s160 = smul.addr %s159, 8
        %s161 = scalar_lea.vmem %s1, %s160
        %s162 = smul.u32 4, %s18
        %s163 = smul.u32 4, %s18
        %p164 = scmp.lt.s32.totalorder %s163, 7
        %s165 = scalar_select %p164, %s163, 7
        %s166 = scalar_lea.vmem %s2, %s165
        %s167 = smul.u32 4, %s18
        %s168 = sld [smem:[#allocation3]]
        %v169 = vld [vmem:[%s161] sm:$0xff]
        %v170 = vld [vmem:[%s161 + $0x8] sm:$0xff]
        %v171 = vld [vmem:[%s161 + $0x10] sm:$0xff]
        %v172 = vld [vmem:[%s161 + $0x18] sm:$0xff]
        %v173 = vld [vmem:[%s161 + $0x20] sm:$0xff]
        %v174 = vld [vmem:[%s161 + $0x28] sm:$0xff]
        %v175 = vld [vmem:[%s161 + $0x30] sm:$0xff]
        %v176 = vld [vmem:[%s161 + $0x38] sm:$0xff]
        %v177 = vld [vmem:[%s161 + $0x40] sm:$0xff]
        %v178 = vld [vmem:[%s161 + $0x48] sm:$0xff]
        %v179 = vld [vmem:[%s161 + $0x50] sm:$0xff]
        %v180 = vld [vmem:[%s161 + $0x58] sm:$0xff]
        %v181 = vld [vmem:[%s161 + $0x60] sm:$0xff]
        %v182 = vld [vmem:[%s161 + $0x68] sm:$0xff]
        %v183 = vld [vmem:[%s161 + $0x70] sm:$0xff]
        %v184 = vld [vmem:[%s161 + $0x78] sm:$0xff]
        %vm185 = vcmask 130048
        %v187 = vsel %vm185, %v169, 0
        %v190 = vsel %vm185, %v170, 0
        %v193 = vsel %vm185, %v171, 0
        %v196 = vsel %vm185, %v172, 0
        %198 = vmatprep.subr.mxu0 0.0
        %199 = vmatpush1.xpose.msra.mxu0 %v187
        %200 = vmatprep.subr.mxu0 0.0
        %201 = vmatpush1.xpose.msra.mxu0 %v190
        %202 = vmatprep.subr.mxu0 0.0
        %203 = vmatpush1.xpose.msra.mxu0 %v193
        %204 = vmatprep.subr.mxu0 0.0
        %205 = vmatpush1.xpose.msra.mxu0 %v196
        %206 = vmatprep.subr.mxu0 0.0
        %207 = vmatpush1.xpose.msra.mxu0 0.0
        %208 = vmatprep.subr.mxu0 0.0
        %209 = vmatpush1.xpose.msra.mxu0 0.0
        %210 = vmatprep.subr.mxu0 0.0
        %211 = vmatpush1.xpose.msra.mxu0 0.0
        %212 = vmatprep.subr.mxu0 0.0
        %213 = vmatpush1.xpose.msra.mxu0 0.0
        %214 = vmatprep.subr.mxu0 0.0
        %215 = vmatpush1.xpose.msra.mxu0 0.0
        %216 = vmatprep.subr.mxu0 0.0
        %217 = vmatpush1.xpose.msra.mxu0 0.0
        %218 = vmatprep.subr.mxu0 0.0
        %219 = vmatpush1.xpose.msra.mxu0 0.0
        %220 = vmatprep.subr.mxu0 0.0
        %221 = vmatpush1.xpose.msra.mxu0 0.0
        %222 = vmatprep.subr.mxu0 0.0
        %223 = vmatpush1.xpose.msra.mxu0 0.0
        %224 = vmatprep.subr.mxu0 0.0
        %225 = vmatpush1.xpose.msra.mxu0 0.0
        %226 = vmatprep.subr.mxu0 0.0
        %227 = vmatpush1.xpose.msra.mxu0 0.0
        %228 = vmatprep.subr.mxu0 0.0
        %229 = vmatpush1.xpose.msra.mxu0 0.0
        %230 = vmatprep.subr.mxu0 0.0
        %231 = vmatpush1.xpose.msra.mxu0 0.0
        %232 = vmatprep.subr.mxu0 0.0
        %233 = vmatpush1.xpose.msra.mxu0 0.0
        %234 = vmatprep.subr.mxu0 0.0
        %235 = vmatpush1.xpose.msra.mxu0 0.0
        %236 = vmatprep.subr.mxu0 0.0
        %237 = vmatpush1.xpose.msra.mxu0 0.0
        %238 = vmatprep.subr.mxu0 0.0
        %239 = vmatpush1.xpose.msra.mxu0 0.0
        %240 = vmatprep.subr.mxu0 0.0
        %241 = vmatpush1.xpose.msra.mxu0 0.0
        %242 = vmatprep.subr.mxu0 0.0
        %243 = vmatpush1.xpose.msra.mxu0 0.0
        %244 = vmatprep.subr.mxu0 0.0
        %245 = vmatpush1.xpose.msra.mxu0 0.0
        %246 = vmatprep.subr.mxu0 0.0
        %247 = vmatpush1.xpose.msra.mxu0 0.0
        %248 = vmatprep.subr.mxu0 0.0
        %249 = vmatpush1.xpose.msra.mxu0 0.0
        %250 = vmatprep.subr.mxu0 0.0
        %251 = vmatpush1.xpose.msra.mxu0 0.0
        %252 = vmatprep.subr.mxu0 0.0
        %253 = vmatpush1.xpose.msra.mxu0 0.0
        %254 = vmatprep.subr.mxu0 0.0
        %255 = vmatpush1.xpose.msra.mxu0 0.0
        %256 = vmatprep.subr.mxu0 0.0
        %257 = vmatpush1.xpose.msra.mxu0 0.0
        %258 = vmatprep.subr.mxu0 0.0
        %259 = vmatpush1.xpose.msra.mxu0 0.0
        %260 = vmatprep.subr.mxu0 0.0
        %261 = vmatpush1.xpose.msra.mxu0 0.0
        %262 = vmatprep.mubr.f32.mxu0 0.0
        %263 = vmatmul.mubr.f32.gmra.mrb[0].mxu0 %v187
        %v264 = vpop.f32.mrb[0].mxu0
        %v265 = vadd.f32 0.0, %v264
        %v266 = vpop.f32.mrb[0].mxu0
        %267 = vmatprep.mubr.f32.mxu0 0.0
        %268 = vmatmul.mubr.f32.gmra.mrb[0].mxu0 %v190
        %v269 = vpop.f32.mrb[0].mxu0
        %v270 = vadd.f32 0.0, %v269
        %v271 = vpop.f32.mrb[0].mxu0
        %272 = vmatprep.mubr.f32.mxu0 0.0
        %273 = vmatmul.mubr.f32.gmra.mrb[0].mxu0 %v193
        %v274 = vpop.f32.mrb[0].mxu0
        %v275 = vadd.f32 0.0, %v274
        %v276 = vpop.f32.mrb[0].mxu0
        %277 = vmatprep.mubr.f32.mxu0 0.0
        %278 = vmatmul.mubr.f32.gmra.mrb[0].mxu0 %v196
        %v279 = vpop.f32.mrb[0].mxu0
        %v280 = vadd.f32 0.0, %v279
        %v281 = vpop.f32.mrb[0].mxu0
        %282 = vdwg.mxu0
        %v284 = vsel %vm185, %v173, 0
        %v287 = vsel %vm185, %v174, 0
        %v290 = vsel %vm185, %v175, 0
        %v293 = vsel %vm185, %v176, 0
        %295 = vmatprep.subr.mxu0 0.0
        %296 = vmatpush1.xpose.msra.mxu0 %v284
        %297 = vmatprep.subr.mxu0 0.0
        %298 = vmatpush1.xpose.msra.mxu0 %v287
        %299 = vmatprep.subr.mxu0 0.0
        %300 = vmatpush1.xpose.msra.mxu0 %v290
        %301 = vmatprep.subr.mxu0 0.0
        %302 = vmatpush1.xpose.msra.mxu0 %v293
        %303 = vmatprep.subr.mxu0 0.0
        %304 = vmatpush1.xpose.msra.mxu0 0.0
        %305 = vmatprep.subr.mxu0 0.0
        %306 = vmatpush1.xpose.msra.mxu0 0.0
        %307 = vmatprep.subr.mxu0 0.0
        %308 = vmatpush1.xpose.msra.mxu0 0.0
        %309 = vmatprep.subr.mxu0 0.0
        %310 = vmatpush1.xpose.msra.mxu0 0.0
        %311 = vmatprep.subr.mxu0 0.0
        %312 = vmatpush1.xpose.msra.mxu0 0.0
        %313 = vmatprep.subr.mxu0 0.0
        %314 = vmatpush1.xpose.msra.mxu0 0.0
        %315 = vmatprep.subr.mxu0 0.0
        %316 = vmatpush1.xpose.msra.mxu0 0.0
        %317 = vmatprep.subr.mxu0 0.0
        %318 = vmatpush1.xpose.msra.mxu0 0.0
        %319 = vmatprep.subr.mxu0 0.0
        %320 = vmatpush1.xpose.msra.mxu0 0.0
        %321 = vmatprep.subr.mxu0 0.0
        %322 = vmatpush1.xpose.msra.mxu0 0.0
        %323 = vmatprep.subr.mxu0 0.0
        %324 = vmatpush1.xpose.msra.mxu0 0.0
        %325 = vmatprep.subr.mxu0 0.0
        %326 = vmatpush1.xpose.msra.mxu0 0.0
        %327 = vmatprep.subr.mxu0 0.0
        %328 = vmatpush1.xpose.msra.mxu0 0.0
        %329 = vmatprep.subr.mxu0 0.0
        %330 = vmatpush1.xpose.msra.mxu0 0.0
        %331 = vmatprep.subr.mxu0 0.0
        %332 = vmatpush1.xpose.msra.mxu0 0.0
        %333 = vmatprep.subr.mxu0 0.0
        %334 = vmatpush1.xpose.msra.mxu0 0.0
        %335 = vmatprep.subr.mxu0 0.0
        %336 = vmatpush1.xpose.msra.mxu0 0.0
        %337 = vmatprep.subr.mxu0 0.0
        %338 = vmatpush1.xpose.msra.mxu0 0.0
        %339 = vmatprep.subr.mxu0 0.0
        %340 = vmatpush1.xpose.msra.mxu0 0.0
        %341 = vmatprep.subr.mxu0 0.0
        %342 = vmatpush1.xpose.msra.mxu0 0.0
        %343 = vmatprep.subr.mxu0 0.0
        %344 = vmatpush1.xpose.msra.mxu0 0.0
        %345 = vmatprep.subr.mxu0 0.0
        %346 = vmatpush1.xpose.msra.mxu0 0.0
        %347 = vmatprep.subr.mxu0 0.0
        %348 = vmatpush1.xpose.msra.mxu0 0.0
        %349 = vmatprep.subr.mxu0 0.0
        %350 = vmatpush1.xpose.msra.mxu0 0.0
        %351 = vmatprep.subr.mxu0 0.0
        %352 = vmatpush1.xpose.msra.mxu0 0.0
        %353 = vmatprep.subr.mxu0 0.0
        %354 = vmatpush1.xpose.msra.mxu0 0.0
        %355 = vmatprep.subr.mxu0 0.0
        %356 = vmatpush1.xpose.msra.mxu0 0.0
        %357 = vmatprep.subr.mxu0 0.0
        %358 = vmatpush1.xpose.msra.mxu0 0.0
        %359 = vmatprep.mubr.f32.mxu0 0.0
        %360 = vmatmul.mubr.f32.gmra.mrb[0].mxu0 %v284
        %v361 = vpop.f32.mrb[0].mxu0
        %v362 = vadd.f32 0.0, %v361
        %v363 = vpop.f32.mrb[0].mxu0
        %364 = vmatprep.mubr.f32.mxu0 0.0
        %365 = vmatmul.mubr.f32.gmra.mrb[0].mxu0 %v287
        %v366 = vpop.f32.mrb[0].mxu0
        %v367 = vadd.f32 0.0, %v366
        %v368 = vpop.f32.mrb[0].mxu0
        %369 = vmatprep.mubr.f32.mxu0 0.0
        %370 = vmatmul.mubr.f32.gmra.mrb[0].mxu0 %v290
        %v371 = vpop.f32.mrb[0].mxu0
        %v372 = vadd.f32 0.0, %v371
        %v373 = vpop.f32.mrb[0].mxu0
        %374 = vmatprep.mubr.f32.mxu0 0.0
        %375 = vmatmul.mubr.f32.gmra.mrb[0].mxu0 %v293
        %v376 = vpop.f32.mrb[0].mxu0
        %v377 = vadd.f32 0.0, %v376
        %v378 = vpop.f32.mrb[0].mxu0
        %379 = vdwg.mxu0
        %v381 = vsel %vm185, %v177, 0
        %v384 = vsel %vm185, %v178, 0
        %v387 = vsel %vm185, %v179, 0
        %v390 = vsel %vm185, %v180, 0
        %392 = vmatprep.subr.mxu0 0.0
        %393 = vmatpush1.xpose.msra.mxu0 %v381
        %394 = vmatprep.subr.mxu0 0.0
        %395 = vmatpush1.xpose.msra.mxu0 %v384
        %396 = vmatprep.subr.mxu0 0.0
        %397 = vmatpush1.xpose.msra.mxu0 %v387
        %398 = vmatprep.subr.mxu0 0.0
        %399 = vmatpush1.xpose.msra.mxu0 %v390
        %400 = vmatprep.subr.mxu0 0.0
        %401 = vmatpush1.xpose.msra.mxu0 0.0
        %402 = vmatprep.subr.mxu0 0.0
        %403 = vmatpush1.xpose.msra.mxu0 0.0
        %404 = vmatprep.subr.mxu0 0.0
        %405 = vmatpush1.xpose.msra.mxu0 0.0
        %406 = vmatprep.subr.mxu0 0.0
        %407 = vmatpush1.xpose.msra.mxu0 0.0
        %408 = vmatprep.subr.mxu0 0.0
        %409 = vmatpush1.xpose.msra.mxu0 0.0
        %410 = vmatprep.subr.mxu0 0.0
        %411 = vmatpush1.xpose.msra.mxu0 0.0
        %412 = vmatprep.subr.mxu0 0.0
        %413 = vmatpush1.xpose.msra.mxu0 0.0
        %414 = vmatprep.subr.mxu0 0.0
        %415 = vmatpush1.xpose.msra.mxu0 0.0
        %416 = vmatprep.subr.mxu0 0.0
        %417 = vmatpush1.xpose.msra.mxu0 0.0
        %418 = vmatprep.subr.mxu0 0.0
        %419 = vmatpush1.xpose.msra.mxu0 0.0
        %420 = vmatprep.subr.mxu0 0.0
        %421 = vmatpush1.xpose.msra.mxu0 0.0
        %422 = vmatprep.subr.mxu0 0.0
        %423 = vmatpush1.xpose.msra.mxu0 0.0
        %424 = vmatprep.subr.mxu0 0.0
        %425 = vmatpush1.xpose.msra.mxu0 0.0
        %426 = vmatprep.subr.mxu0 0.0
        %427 = vmatpush1.xpose.msra.mxu0 0.0
        %428 = vmatprep.subr.mxu0 0.0
        %429 = vmatpush1.xpose.msra.mxu0 0.0
        %430 = vmatprep.subr.mxu0 0.0
        %431 = vmatpush1.xpose.msra.mxu0 0.0
        %432 = vmatprep.subr.mxu0 0.0
        %433 = vmatpush1.xpose.msra.mxu0 0.0
        %434 = vmatprep.subr.mxu0 0.0
        %435 = vmatpush1.xpose.msra.mxu0 0.0
        %436 = vmatprep.subr.mxu0 0.0
        %437 = vmatpush1.xpose.msra.mxu0 0.0
        %438 = vmatprep.subr.mxu0 0.0
        %439 = vmatpush1.xpose.msra.mxu0 0.0
        %440 = vmatprep.subr.mxu0 0.0
        %441 = vmatpush1.xpose.msra.mxu0 0.0
        %442 = vmatprep.subr.mxu0 0.0
        %443 = vmatpush1.xpose.msra.mxu0 0.0
        %444 = vmatprep.subr.mxu0 0.0
        %445 = vmatpush1.xpose.msra.mxu0 0.0
        %446 = vmatprep.subr.mxu0 0.0
        %447 = vmatpush1.xpose.msra.mxu0 0.0
        %448 = vmatprep.subr.mxu0 0.0
        %449 = vmatpush1.xpose.msra.mxu0 0.0
        %450 = vmatprep.subr.mxu0 0.0
        %451 = vmatpush1.xpose.msra.mxu0 0.0
        %452 = vmatprep.subr.mxu0 0.0
        %453 = vmatpush1.xpose.msra.mxu0 0.0
        %454 = vmatprep.subr.mxu0 0.0
        %455 = vmatpush1.xpose.msra.mxu0 0.0
        %456 = vmatprep.mubr.f32.mxu0 0.0
        %457 = vmatmul.mubr.f32.gmra.mrb[0].mxu0 %v381
        %v458 = vpop.f32.mrb[0].mxu0
        %v459 = vadd.f32 0.0, %v458
        %v460 = vpop.f32.mrb[0].mxu0
        %461 = vmatprep.mubr.f32.mxu0 0.0
        %462 = vmatmul.mubr.f32.gmra.mrb[0].mxu0 %v384
        %v463 = vpop.f32.mrb[0].mxu0
        %v464 = vadd.f32 0.0, %v463
        %v465 = vpop.f32.mrb[0].mxu0
        %466 = vmatprep.mubr.f32.mxu0 0.0
        %467 = vmatmul.mubr.f32.gmra.mrb[0].mxu0 %v387
        %v468 = vpop.f32.mrb[0].mxu0
        %v469 = vadd.f32 0.0, %v468
        %v470 = vpop.f32.mrb[0].mxu0
        %471 = vmatprep.mubr.f32.mxu0 0.0
        %472 = vmatmul.mubr.f32.gmra.mrb[0].mxu0 %v390
        %v473 = vpop.f32.mrb[0].mxu0
        %v474 = vadd.f32 0.0, %v473
        %v475 = vpop.f32.mrb[0].mxu0
        %476 = vdwg.mxu0
        %v478 = vsel %vm185, %v181, 0
        %v481 = vsel %vm185, %v182, 0
        %v484 = vsel %vm185, %v183, 0
        %v487 = vsel %vm185, %v184, 0
        %489 = vmatprep.subr.mxu0 0.0
        %490 = vmatpush1.xpose.msra.mxu0 %v478
        %491 = vmatprep.subr.mxu0 0.0
        %492 = vmatpush1.xpose.msra.mxu0 %v481
        %493 = vmatprep.subr.mxu0 0.0
        %494 = vmatpush1.xpose.msra.mxu0 %v484
        %495 = vmatprep.subr.mxu0 0.0
        %496 = vmatpush1.xpose.msra.mxu0 %v487
        %497 = vmatprep.subr.mxu0 0.0
        %498 = vmatpush1.xpose.msra.mxu0 0.0
        %499 = vmatprep.subr.mxu0 0.0
        %500 = vmatpush1.xpose.msra.mxu0 0.0
        %501 = vmatprep.subr.mxu0 0.0
        %502 = vmatpush1.xpose.msra.mxu0 0.0
        %503 = vmatprep.subr.mxu0 0.0
        %504 = vmatpush1.xpose.msra.mxu0 0.0
        %505 = vmatprep.subr.mxu0 0.0
        %506 = vmatpush1.xpose.msra.mxu0 0.0
        %507 = vmatprep.subr.mxu0 0.0
        %508 = vmatpush1.xpose.msra.mxu0 0.0
        %509 = vmatprep.subr.mxu0 0.0
        %510 = vmatpush1.xpose.msra.mxu0 0.0
        %511 = vmatprep.subr.mxu0 0.0
        %512 = vmatpush1.xpose.msra.mxu0 0.0
        %513 = vmatprep.subr.mxu0 0.0
        %514 = vmatpush1.xpose.msra.mxu0 0.0
        %515 = vmatprep.subr.mxu0 0.0
        %516 = vmatpush1.xpose.msra.mxu0 0.0
        %517 = vmatprep.subr.mxu0 0.0
        %518 = vmatpush1.xpose.msra.mxu0 0.0
        %519 = vmatprep.subr.mxu0 0.0
        %520 = vmatpush1.xpose.msra.mxu0 0.0
        %521 = vmatprep.subr.mxu0 0.0
        %522 = vmatpush1.xpose.msra.mxu0 0.0
        %523 = vmatprep.subr.mxu0 0.0
        %524 = vmatpush1.xpose.msra.mxu0 0.0
        %525 = vmatprep.subr.mxu0 0.0
        %526 = vmatpush1.xpose.msra.mxu0 0.0
        %527 = vmatprep.subr.mxu0 0.0
        %528 = vmatpush1.xpose.msra.mxu0 0.0
        %529 = vmatprep.subr.mxu0 0.0
        %530 = vmatpush1.xpose.msra.mxu0 0.0
        %531 = vmatprep.subr.mxu0 0.0
        %532 = vmatpush1.xpose.msra.mxu0 0.0
        %533 = vmatprep.subr.mxu0 0.0
        %534 = vmatpush1.xpose.msra.mxu0 0.0
        %535 = vmatprep.subr.mxu0 0.0
        %536 = vmatpush1.xpose.msra.mxu0 0.0
        %537 = vmatprep.subr.mxu0 0.0
        %538 = vmatpush1.xpose.msra.mxu0 0.0
        %539 = vmatprep.subr.mxu0 0.0
        %540 = vmatpush1.xpose.msra.mxu0 0.0
        %541 = vmatprep.subr.mxu0 0.0
        %542 = vmatpush1.xpose.msra.mxu0 0.0
        %543 = vmatprep.subr.mxu0 0.0
        %544 = vmatpush1.xpose.msra.mxu0 0.0
        %545 = vmatprep.subr.mxu0 0.0
        %546 = vmatpush1.xpose.msra.mxu0 0.0
        %547 = vmatprep.subr.mxu0 0.0
        %548 = vmatpush1.xpose.msra.mxu0 0.0
        %549 = vmatprep.subr.mxu0 0.0
        %550 = vmatpush1.xpose.msra.mxu0 0.0
        %551 = vmatprep.subr.mxu0 0.0
        %552 = vmatpush1.xpose.msra.mxu0 0.0
        %553 = vmatprep.mubr.f32.mxu0 0.0
        %554 = vmatmul.mubr.f32.gmra.mrb[0].mxu0 %v478
        %v555 = vpop.f32.mrb[0].mxu0
        %v556 = vadd.f32 0.0, %v555
        %v557 = vpop.f32.mrb[0].mxu0
        %558 = vmatprep.mubr.f32.mxu0 0.0
        %559 = vmatmul.mubr.f32.gmra.mrb[0].mxu0 %v481
        %v560 = vpop.f32.mrb[0].mxu0
        %v561 = vadd.f32 0.0, %v560
        %v562 = vpop.f32.mrb[0].mxu0
        %563 = vmatprep.mubr.f32.mxu0 0.0
        %564 = vmatmul.mubr.f32.gmra.mrb[0].mxu0 %v484
        %v565 = vpop.f32.mrb[0].mxu0
        %v566 = vadd.f32 0.0, %v565
        %v567 = vpop.f32.mrb[0].mxu0
        %568 = vmatprep.mubr.f32.mxu0 0.0
        %569 = vmatmul.mubr.f32.gmra.mrb[0].mxu0 %v487
        %v570 = vpop.f32.mrb[0].mxu0
        %v571 = vadd.f32 0.0, %v570
        %v572 = vpop.f32.mrb[0].mxu0
        %573 = vdwg.mxu0
        %v574 = vmul.f32 %v169, %v169
        %v575 = vmul.f32 %v170, %v170
        %v576 = vmul.f32 %v171, %v171
        %v577 = vmul.f32 %v172, %v172
        %v578 = vmul.f32 %v173, %v173
        %v579 = vmul.f32 %v174, %v174
        %v580 = vmul.f32 %v175, %v175
        %v581 = vmul.f32 %v176, %v176
        %v582 = vmul.f32 %v177, %v177
        %v583 = vmul.f32 %v178, %v178
        %v584 = vmul.f32 %v179, %v179
        %v585 = vmul.f32 %v180, %v180
        %v586 = vmul.f32 %v181, %v181
        %v587 = vmul.f32 %v182, %v182
        %v588 = vmul.f32 %v183, %v183
        %v589 = vmul.f32 %v184, %v184
        %v590 = vsel %vm185, %v574, 0.0
        %591 = vadd.xlane.f32.xlu0 %v590
        %v592 = vpop.xlane.xlu0 %591
        %v593 = vsel %vm185, %v575, 0.0
        %594 = vadd.xlane.f32.xlu0 %v593
        %v595 = vpop.xlane.xlu0 %594
        %v596 = vsel %vm185, %v576, 0.0
        %597 = vadd.xlane.f32.xlu0 %v596
        %v598 = vpop.xlane.xlu0 %597
        %v599 = vsel %vm185, %v577, 0.0
        %600 = vadd.xlane.f32.xlu0 %v599
        %v601 = vpop.xlane.xlu0 %600
        %v602 = vsel %vm185, %v578, 0.0
        %603 = vadd.xlane.f32.xlu0 %v602
        %v604 = vpop.xlane.xlu0 %603
        %v605 = vsel %vm185, %v579, 0.0
        %606 = vadd.xlane.f32.xlu0 %v605
        %v607 = vpop.xlane.xlu0 %606
        %v608 = vsel %vm185, %v580, 0.0
        %609 = vadd.xlane.f32.xlu0 %v608
        %v610 = vpop.xlane.xlu0 %609
        %v611 = vsel %vm185, %v581, 0.0
        %612 = vadd.xlane.f32.xlu0 %v611
        %v613 = vpop.xlane.xlu0 %612
        %v614 = vsel %vm185, %v582, 0.0
        %615 = vadd.xlane.f32.xlu0 %v614
        %v616 = vpop.xlane.xlu0 %615
        %v617 = vsel %vm185, %v583, 0.0
        %618 = vadd.xlane.f32.xlu0 %v617
        %v619 = vpop.xlane.xlu0 %618
        %v620 = vsel %vm185, %v584, 0.0
        %621 = vadd.xlane.f32.xlu0 %v620
        %v622 = vpop.xlane.xlu0 %621
        %v623 = vsel %vm185, %v585, 0.0
        %624 = vadd.xlane.f32.xlu0 %v623
        %v625 = vpop.xlane.xlu0 %624
        %v626 = vsel %vm185, %v586, 0.0
        %627 = vadd.xlane.f32.xlu0 %v626
        %v628 = vpop.xlane.xlu0 %627
        %v629 = vsel %vm185, %v587, 0.0
        %630 = vadd.xlane.f32.xlu0 %v629
        %v631 = vpop.xlane.xlu0 %630
        %v632 = vsel %vm185, %v588, 0.0
        %633 = vadd.xlane.f32.xlu0 %v632
        %v634 = vpop.xlane.xlu0 %633
        %v635 = vsel %vm185, %v589, 0.0
        %636 = vadd.xlane.f32.xlu0 %v635
        %v637 = vpop.xlane.xlu0 %636
        %v638 = vmul.f32 %v265, 2.0
        %v639 = vmul.f32 %v270, 2.0
        %v640 = vmul.f32 %v275, 2.0
        %v641 = vmul.f32 %v280, 2.0
        %v642 = vmul.f32 %v362, 2.0
        %v643 = vmul.f32 %v367, 2.0
        %v644 = vmul.f32 %v372, 2.0
        %v645 = vmul.f32 %v377, 2.0
        %v646 = vmul.f32 %v459, 2.0
        %v647 = vmul.f32 %v464, 2.0
        %v648 = vmul.f32 %v469, 2.0
        %v649 = vmul.f32 %v474, 2.0
        %v650 = vmul.f32 %v556, 2.0
        %v651 = vmul.f32 %v561, 2.0
        %v652 = vmul.f32 %v566, 2.0
        %v653 = vmul.f32 %v571, 2.0
        %v654 = vsub.f32 %v638, %v592
        %v655 = vsub.f32 %v639, %v595
        %v656 = vsub.f32 %v640, %v598
        %v657 = vsub.f32 %v641, %v601
        %v658 = vsub.f32 %v642, %v604
        %v659 = vsub.f32 %v643, %v607
        %v660 = vsub.f32 %v644, %v610
        %v661 = vsub.f32 %v645, %v613
        %v662 = vsub.f32 %v646, %v616
        %v663 = vsub.f32 %v647, %v619
        %v664 = vsub.f32 %v648, %v622
        %v665 = vsub.f32 %v649, %v625
        %v666 = vsub.f32 %v650, %v628
        %v667 = vsub.f32 %v651, %v631
        %v668 = vsub.f32 %v652, %v634
        %v669 = vsub.f32 %v653, %v637
        %670 = vxpose.xlu0.b32.start [1/16] %v592, 128
        %671 = vxpose.xlu0.b32.cont [2/16] %v595, 128
        %672 = vxpose.xlu0.b32.cont [3/16] %v598, 128
        %673 = vxpose.xlu0.b32.cont [4/16] %v601, 128
        %674 = vxpose.xlu0.b32.cont [5/16] 0.0, 128
        %675 = vxpose.xlu0.b32.cont [6/16] 0.0, 128
        %676 = vxpose.xlu0.b32.cont [7/16] 0.0, 128
        %677 = vxpose.xlu0.b32.cont [8/16] 0.0, 128
        %678 = vxpose.xlu0.b32.cont [9/16] 0.0, 128
        %679 = vxpose.xlu0.b32.cont [10/16] 0.0, 128
        %680 = vxpose.xlu0.b32.cont [11/16] 0.0, 128
        %681 = vxpose.xlu0.b32.cont [12/16] 0.0, 128
        %682 = vxpose.xlu0.b32.cont [13/16] 0.0, 128
        %683 = vxpose.xlu0.b32.cont [14/16] 0.0, 128
        %684 = vxpose.xlu0.b32.cont [15/16] 0.0, 128
        %685 = vxpose.xlu0.b32.end [16/16] 0.0, 128
        %v686 = vpop.trf.xlu0
        %v687 = vpop.trf.xlu0
        %v688 = vpop.trf.xlu0
        %v689 = vpop.trf.xlu0
        %v690 = vpop.trf.xlu0
        %v691 = vpop.trf.xlu0
        %v692 = vpop.trf.xlu0
        %v693 = vpop.trf.xlu0
        %v694 = vpop.trf.xlu0
        %v695 = vpop.trf.xlu0
        %v696 = vpop.trf.xlu0
        %v697 = vpop.trf.xlu0
        %v698 = vpop.trf.xlu0
        %v699 = vpop.trf.xlu0
        %v700 = vpop.trf.xlu0
        %v701 = vpop.trf.xlu0
        %702 = vxpose.xlu0.b32.start [1/16] %v604, 128
        %703 = vxpose.xlu0.b32.cont [2/16] %v607, 128
        %704 = vxpose.xlu0.b32.cont [3/16] %v610, 128
        %705 = vxpose.xlu0.b32.cont [4/16] %v613, 128
        %706 = vxpose.xlu0.b32.cont [5/16] 0.0, 128
        %707 = vxpose.xlu0.b32.cont [6/16] 0.0, 128
        %708 = vxpose.xlu0.b32.cont [7/16] 0.0, 128
        %709 = vxpose.xlu0.b32.cont [8/16] 0.0, 128
        %710 = vxpose.xlu0.b32.cont [9/16] 0.0, 128
        %711 = vxpose.xlu0.b32.cont [10/16] 0.0, 128
        %712 = vxpose.xlu0.b32.cont [11/16] 0.0, 128
        %713 = vxpose.xlu0.b32.cont [12/16] 0.0, 128
        %714 = vxpose.xlu0.b32.cont [13/16] 0.0, 128
        %715 = vxpose.xlu0.b32.cont [14/16] 0.0, 128
        %716 = vxpose.xlu0.b32.cont [15/16] 0.0, 128
        %717 = vxpose.xlu0.b32.end [16/16] 0.0, 128
        %v718 = vpop.trf.xlu0
        %v719 = vpop.trf.xlu0
        %v720 = vpop.trf.xlu0
        %v721 = vpop.trf.xlu0
        %v722 = vpop.trf.xlu0
        %v723 = vpop.trf.xlu0
        %v724 = vpop.trf.xlu0
        %v725 = vpop.trf.xlu0
        %v726 = vpop.trf.xlu0
        %v727 = vpop.trf.xlu0
        %v728 = vpop.trf.xlu0
        %v729 = vpop.trf.xlu0
        %v730 = vpop.trf.xlu0
        %v731 = vpop.trf.xlu0
        %v732 = vpop.trf.xlu0
        %v733 = vpop.trf.xlu0
        %734 = vxpose.xlu0.b32.start [1/16] %v616, 128
        %735 = vxpose.xlu0.b32.cont [2/16] %v619, 128
        %736 = vxpose.xlu0.b32.cont [3/16] %v622, 128
        %737 = vxpose.xlu0.b32.cont [4/16] %v625, 128
        %738 = vxpose.xlu0.b32.cont [5/16] 0.0, 128
        %739 = vxpose.xlu0.b32.cont [6/16] 0.0, 128
        %740 = vxpose.xlu0.b32.cont [7/16] 0.0, 128
        %741 = vxpose.xlu0.b32.cont [8/16] 0.0, 128
        %742 = vxpose.xlu0.b32.cont [9/16] 0.0, 128
        %743 = vxpose.xlu0.b32.cont [10/16] 0.0, 128
        %744 = vxpose.xlu0.b32.cont [11/16] 0.0, 128
        %745 = vxpose.xlu0.b32.cont [12/16] 0.0, 128
        %746 = vxpose.xlu0.b32.cont [13/16] 0.0, 128
        %747 = vxpose.xlu0.b32.cont [14/16] 0.0, 128
        %748 = vxpose.xlu0.b32.cont [15/16] 0.0, 128
        %749 = vxpose.xlu0.b32.end [16/16] 0.0, 128
        %v750 = vpop.trf.xlu0
        %v751 = vpop.trf.xlu0
        %v752 = vpop.trf.xlu0
        %v753 = vpop.trf.xlu0
        %v754 = vpop.trf.xlu0
        %v755 = vpop.trf.xlu0
        %v756 = vpop.trf.xlu0
        %v757 = vpop.trf.xlu0
        %v758 = vpop.trf.xlu0
        %v759 = vpop.trf.xlu0
        %v760 = vpop.trf.xlu0
        %v761 = vpop.trf.xlu0
        %v762 = vpop.trf.xlu0
        %v763 = vpop.trf.xlu0
        %v764 = vpop.trf.xlu0
        %v765 = vpop.trf.xlu0
        %766 = vxpose.xlu0.b32.start [1/16] %v628, 128
        %767 = vxpose.xlu0.b32.cont [2/16] %v631, 128
        %768 = vxpose.xlu0.b32.cont [3/16] %v634, 128
        %769 = vxpose.xlu0.b32.cont [4/16] %v637, 128
        %770 = vxpose.xlu0.b32.cont [5/16] 0.0, 128
        %771 = vxpose.xlu0.b32.cont [6/16] 0.0, 128
        %772 = vxpose.xlu0.b32.cont [7/16] 0.0, 128
        %773 = vxpose.xlu0.b32.cont [8/16] 0.0, 128
        %774 = vxpose.xlu0.b32.cont [9/16] 0.0, 128
        %775 = vxpose.xlu0.b32.cont [10/16] 0.0, 128
        %776 = vxpose.xlu0.b32.cont [11/16] 0.0, 128
        %777 = vxpose.xlu0.b32.cont [12/16] 0.0, 128
        %778 = vxpose.xlu0.b32.cont [13/16] 0.0, 128
        %779 = vxpose.xlu0.b32.cont [14/16] 0.0, 128
        %780 = vxpose.xlu0.b32.cont [15/16] 0.0, 128
        %781 = vxpose.xlu0.b32.end [16/16] 0.0, 128
        %v782 = vpop.trf.xlu0
        %v783 = vpop.trf.xlu0
        %v784 = vpop.trf.xlu0
        %v785 = vpop.trf.xlu0
        %v786 = vpop.trf.xlu0
        %v787 = vpop.trf.xlu0
        %v788 = vpop.trf.xlu0
        %v789 = vpop.trf.xlu0
        %v790 = vpop.trf.xlu0
        %v791 = vpop.trf.xlu0
        %v792 = vpop.trf.xlu0
        %v793 = vpop.trf.xlu0
        %v794 = vpop.trf.xlu0
        %v795 = vpop.trf.xlu0
        %v796 = vpop.trf.xlu0
        %v797 = vpop.trf.xlu0
        %v798 = vlaneseq
        %v799 = vshrl.u32 %v798, 7
        %v800 = vsub.s32 0, %v799
        %v801 = vrot.slane %v686, %v800
        %v802 = vlaneseq
        %v803 = vshrl.u32 %v802, 7
        %v804 = vsub.s32 0, %v803
        %v805 = vrot.slane %v718, %v804
        %v806 = vlaneseq
        %v807 = vshrl.u32 %v806, 7
        %v808 = vsub.s32 0, %v807
        %v809 = vrot.slane %v750, %v808
        %v810 = vlaneseq
        %v811 = vshrl.u32 %v810, 7
        %v812 = vsub.s32 0, %v811
        %v813 = vrot.slane %v782, %v812
        %v814 = vsub.f32 %v654, %v801
        %v815 = vsub.f32 %v655, %v801
        %v816 = vsub.f32 %v656, %v801
        %v817 = vsub.f32 %v657, %v801
        %v818 = vsub.f32 %v658, %v805
        %v819 = vsub.f32 %v659, %v805
        %v820 = vsub.f32 %v660, %v805
        %v821 = vsub.f32 %v661, %v805
        %v822 = vsub.f32 %v662, %v809
        %v823 = vsub.f32 %v663, %v809
        %v824 = vsub.f32 %v664, %v809
        %v825 = vsub.f32 %v665, %v809
        %v826 = vsub.f32 %v666, %v813
        %v827 = vsub.f32 %v667, %v813
        %v828 = vsub.f32 %v668, %v813
        %v829 = vsub.f32 %v669, %v813
        %v830 = vstv %s168
        %v831 = vmul.f32 %v830, %v814
        %v832 = vmul.f32 %v830, %v815
        %v833 = vmul.f32 %v830, %v816
        %v834 = vmul.f32 %v830, %v817
        %v835 = vmul.f32 %v830, %v818
        %v836 = vmul.f32 %v830, %v819
        %v837 = vmul.f32 %v830, %v820
        %v838 = vmul.f32 %v830, %v821
        %v839 = vmul.f32 %v830, %v822
        %v840 = vmul.f32 %v830, %v823
        %v841 = vmul.f32 %v830, %v824
        %v842 = vmul.f32 %v830, %v825
        %v843 = vmul.f32 %v830, %v826
        %v844 = vmul.f32 %v830, %v827
        %v845 = vmul.f32 %v830, %v828
        %v846 = vmul.f32 %v830, %v829
        %v847 = vmin.f32 %v831, 0.0
        %v848 = vmin.f32 %v832, 0.0
        %v849 = vmin.f32 %v833, 0.0
        %v850 = vmin.f32 %v834, 0.0
        %v851 = vmin.f32 %v835, 0.0
        %v852 = vmin.f32 %v836, 0.0
        %v853 = vmin.f32 %v837, 0.0
        %v854 = vmin.f32 %v838, 0.0
        %v855 = vmin.f32 %v839, 0.0
        %v856 = vmin.f32 %v840, 0.0
        %v857 = vmin.f32 %v841, 0.0
        %v858 = vmin.f32 %v842, 0.0
        %v859 = vmin.f32 %v843, 0.0
        %v860 = vmin.f32 %v844, 0.0
        %v861 = vmin.f32 %v845, 0.0
        %v862 = vmin.f32 %v846, 0.0
        %v863 = vmul.f32 %v847, 1.442695
        %v864 = vpow.pop %v863
        %v865 = vmul.f32 %v848, 1.442695
        %v866 = vpow.pop %v865
        %v867 = vmul.f32 %v849, 1.442695
        %v868 = vpow.pop %v867
        %v869 = vmul.f32 %v850, 1.442695
        %v870 = vpow.pop %v869
        %v871 = vmul.f32 %v851, 1.442695
        %v872 = vpow.pop %v871
        %v873 = vmul.f32 %v852, 1.442695
        %v874 = vpow.pop %v873
        %v875 = vmul.f32 %v853, 1.442695
        %v876 = vpow.pop %v875
        %v877 = vmul.f32 %v854, 1.442695
        %v878 = vpow.pop %v877
        %v879 = vmul.f32 %v855, 1.442695
        %v880 = vpow.pop %v879
        %v881 = vmul.f32 %v856, 1.442695
        %v882 = vpow.pop %v881
        %v883 = vmul.f32 %v857, 1.442695
        %v884 = vpow.pop %v883
        %v885 = vmul.f32 %v858, 1.442695
        %v886 = vpow.pop %v885
        %v887 = vmul.f32 %v859, 1.442695
        %v888 = vpow.pop %v887
        %v889 = vmul.f32 %v860, 1.442695
        %v890 = vpow.pop %v889
        %v891 = vmul.f32 %v861, 1.442695
        %v892 = vpow.pop %v891
        %v893 = vmul.f32 %v862, 1.442695
        %v894 = vpow.pop %v893
        %v895 = vld [vmem:[%s166] sm:$0x1]
        %v896 = vld [vmem:[%s166 + $0x1] sm:$0x1]
        %v897 = vld [vmem:[%s166 + $0x2] sm:$0x1]
        %v898 = vld [vmem:[%s166 + $0x3] sm:$0x1]
        %899 = vxpose.xlu0.b32.start [1/16] %v895, 128
        %900 = vxpose.xlu0.b32.cont [2/16] 0, 128
        %901 = vxpose.xlu0.b32.cont [3/16] 0, 128
        %902 = vxpose.xlu0.b32.cont [4/16] 0, 128
        %903 = vxpose.xlu0.b32.cont [5/16] 0, 128
        %904 = vxpose.xlu0.b32.cont [6/16] 0, 128
        %905 = vxpose.xlu0.b32.cont [7/16] 0, 128
        %906 = vxpose.xlu0.b32.cont [8/16] 0, 128
        %907 = vxpose.xlu0.b32.cont [9/16] 0, 128
        %908 = vxpose.xlu0.b32.cont [10/16] 0, 128
        %909 = vxpose.xlu0.b32.cont [11/16] 0, 128
        %910 = vxpose.xlu0.b32.cont [12/16] 0, 128
        %911 = vxpose.xlu0.b32.cont [13/16] 0, 128
        %912 = vxpose.xlu0.b32.cont [14/16] 0, 128
        %913 = vxpose.xlu0.b32.cont [15/16] 0, 128
        %914 = vxpose.xlu0.b32.end [16/16] 0, 128
        %v915 = vpop.trf.xlu0
        %v916 = vpop.trf.xlu0
        %v917 = vpop.trf.xlu0
        %v918 = vpop.trf.xlu0
        %v919 = vpop.trf.xlu0
        %v920 = vpop.trf.xlu0
        %v921 = vpop.trf.xlu0
        %v922 = vpop.trf.xlu0
        %v923 = vpop.trf.xlu0
        %v924 = vpop.trf.xlu0
        %v925 = vpop.trf.xlu0
        %v926 = vpop.trf.xlu0
        %v927 = vpop.trf.xlu0
        %v928 = vpop.trf.xlu0
        %v929 = vpop.trf.xlu0
        %v930 = vpop.trf.xlu0
        %931 = vxpose.xlu0.b32.start [1/16] %v896, 128
        %932 = vxpose.xlu0.b32.cont [2/16] 0, 128
        %933 = vxpose.xlu0.b32.cont [3/16] 0, 128
        %934 = vxpose.xlu0.b32.cont [4/16] 0, 128
        %935 = vxpose.xlu0.b32.cont [5/16] 0, 128
        %936 = vxpose.xlu0.b32.cont [6/16] 0, 128
        %937 = vxpose.xlu0.b32.cont [7/16] 0, 128
        %938 = vxpose.xlu0.b32.cont [8/16] 0, 128
        %939 = vxpose.xlu0.b32.cont [9/16] 0, 128
        %940 = vxpose.xlu0.b32.cont [10/16] 0, 128
        %941 = vxpose.xlu0.b32.cont [11/16] 0, 128
        %942 = vxpose.xlu0.b32.cont [12/16] 0, 128
        %943 = vxpose.xlu0.b32.cont [13/16] 0, 128
        %944 = vxpose.xlu0.b32.cont [14/16] 0, 128
        %945 = vxpose.xlu0.b32.cont [15/16] 0, 128
        %946 = vxpose.xlu0.b32.end [16/16] 0, 128
        %v947 = vpop.trf.xlu0
        %v948 = vpop.trf.xlu0
        %v949 = vpop.trf.xlu0
        %v950 = vpop.trf.xlu0
        %v951 = vpop.trf.xlu0
        %v952 = vpop.trf.xlu0
        %v953 = vpop.trf.xlu0
        %v954 = vpop.trf.xlu0
        %v955 = vpop.trf.xlu0
        %v956 = vpop.trf.xlu0
        %v957 = vpop.trf.xlu0
        %v958 = vpop.trf.xlu0
        %v959 = vpop.trf.xlu0
        %v960 = vpop.trf.xlu0
        %v961 = vpop.trf.xlu0
        %v962 = vpop.trf.xlu0
        %963 = vxpose.xlu0.b32.start [1/16] %v897, 128
        %964 = vxpose.xlu0.b32.cont [2/16] 0, 128
        %965 = vxpose.xlu0.b32.cont [3/16] 0, 128
        %966 = vxpose.xlu0.b32.cont [4/16] 0, 128
        %967 = vxpose.xlu0.b32.cont [5/16] 0, 128
        %968 = vxpose.xlu0.b32.cont [6/16] 0, 128
        %969 = vxpose.xlu0.b32.cont [7/16] 0, 128
        %970 = vxpose.xlu0.b32.cont [8/16] 0, 128
        %971 = vxpose.xlu0.b32.cont [9/16] 0, 128
        %972 = vxpose.xlu0.b32.cont [10/16] 0, 128
        %973 = vxpose.xlu0.b32.cont [11/16] 0, 128
        %974 = vxpose.xlu0.b32.cont [12/16] 0, 128
        %975 = vxpose.xlu0.b32.cont [13/16] 0, 128
        %976 = vxpose.xlu0.b32.cont [14/16] 0, 128
        %977 = vxpose.xlu0.b32.cont [15/16] 0, 128
        %978 = vxpose.xlu0.b32.end [16/16] 0, 128
        %v979 = vpop.trf.xlu0
        %v980 = vpop.trf.xlu0
        %v981 = vpop.trf.xlu0
        %v982 = vpop.trf.xlu0
        %v983 = vpop.trf.xlu0
        %v984 = vpop.trf.xlu0
        %v985 = vpop.trf.xlu0
        %v986 = vpop.trf.xlu0
        %v987 = vpop.trf.xlu0
        %v988 = vpop.trf.xlu0
        %v989 = vpop.trf.xlu0
        %v990 = vpop.trf.xlu0
        %v991 = vpop.trf.xlu0
        %v992 = vpop.trf.xlu0
        %v993 = vpop.trf.xlu0
        %v994 = vpop.trf.xlu0
        %995 = vxpose.xlu0.b32.start [1/16] %v898, 128
        %996 = vxpose.xlu0.b32.cont [2/16] 0, 128
        %997 = vxpose.xlu0.b32.cont [3/16] 0, 128
        %998 = vxpose.xlu0.b32.cont [4/16] 0, 128
        %999 = vxpose.xlu0.b32.cont [5/16] 0, 128
        %1000 = vxpose.xlu0.b32.cont [6/16] 0, 128
        %1001 = vxpose.xlu0.b32.cont [7/16] 0, 128
        %1002 = vxpose.xlu0.b32.cont [8/16] 0, 128
        %1003 = vxpose.xlu0.b32.cont [9/16] 0, 128
        %1004 = vxpose.xlu0.b32.cont [10/16] 0, 128
        %1005 = vxpose.xlu0.b32.cont [11/16] 0, 128
        %1006 = vxpose.xlu0.b32.cont [12/16] 0, 128
        %1007 = vxpose.xlu0.b32.cont [13/16] 0, 128
        %1008 = vxpose.xlu0.b32.cont [14/16] 0, 128
        %1009 = vxpose.xlu0.b32.cont [15/16] 0, 128
        %1010 = vxpose.xlu0.b32.end [16/16] 0, 128
        %v1011 = vpop.trf.xlu0
        %v1012 = vpop.trf.xlu0
        %v1013 = vpop.trf.xlu0
        %v1014 = vpop.trf.xlu0
        %v1015 = vpop.trf.xlu0
        %v1016 = vpop.trf.xlu0
        %v1017 = vpop.trf.xlu0
        %v1018 = vpop.trf.xlu0
        %v1019 = vpop.trf.xlu0
        %v1020 = vpop.trf.xlu0
        %v1021 = vpop.trf.xlu0
        %v1022 = vpop.trf.xlu0
        %v1023 = vpop.trf.xlu0
        %v1024 = vpop.trf.xlu0
        %v1025 = vpop.trf.xlu0
        %v1026 = vpop.trf.xlu0
        %1027 = vset.pattern.permute.xlu0 0
        %1028 = vperm.xlu0 %1027, %v915
        %v1029 = vpop.permute.xlu0 %1028
        %1030 = vset.pattern.permute.xlu0 0
        %1031 = vperm.xlu0 %1030, %v916
        %v1032 = vpop.permute.xlu0 %1031
        %1033 = vset.pattern.permute.xlu0 0
        %1034 = vperm.xlu0 %1033, %v917
        %v1035 = vpop.permute.xlu0 %1034
        %1036 = vset.pattern.permute.xlu0 0
        %1037 = vperm.xlu0 %1036, %v918
        %v1038 = vpop.permute.xlu0 %1037
        %1039 = vset.pattern.permute.xlu0 0
        %1040 = vperm.xlu0 %1039, %v947
        %v1041 = vpop.permute.xlu0 %1040
        %1042 = vset.pattern.permute.xlu0 0
        %1043 = vperm.xlu0 %1042, %v948
        %v1044 = vpop.permute.xlu0 %1043
        %1045 = vset.pattern.permute.xlu0 0
        %1046 = vperm.xlu0 %1045, %v949
        %v1047 = vpop.permute.xlu0 %1046
        %1048 = vset.pattern.permute.xlu0 0
        %1049 = vperm.xlu0 %1048, %v950
        %v1050 = vpop.permute.xlu0 %1049
        %1051 = vset.pattern.permute.xlu0 0
        %1052 = vperm.xlu0 %1051, %v979
        %v1053 = vpop.permute.xlu0 %1052
        %1054 = vset.pattern.permute.xlu0 0
        %1055 = vperm.xlu0 %1054, %v980
        %v1056 = vpop.permute.xlu0 %1055
        %1057 = vset.pattern.permute.xlu0 0
        %1058 = vperm.xlu0 %1057, %v981
        %v1059 = vpop.permute.xlu0 %1058
        %1060 = vset.pattern.permute.xlu0 0
        %1061 = vperm.xlu0 %1060, %v982
        %v1062 = vpop.permute.xlu0 %1061
        %1063 = vset.pattern.permute.xlu0 0
        %1064 = vperm.xlu0 %1063, %v1011
        %v1065 = vpop.permute.xlu0 %1064
        %1066 = vset.pattern.permute.xlu0 0
        %1067 = vperm.xlu0 %1066, %v1012
        %v1068 = vpop.permute.xlu0 %1067
        %1069 = vset.pattern.permute.xlu0 0
        %1070 = vperm.xlu0 %1069, %v1013
        %v1071 = vpop.permute.xlu0 %1070
        %1072 = vset.pattern.permute.xlu0 0
        %1073 = vperm.xlu0 %1072, %v1014
        %v1074 = vpop.permute.xlu0 %1073
        %v1075 = vlaneseq
        %v1076 = vshrl.u32 %v1075, 7
        %v1077 = vsub.s32 0, %v1076
        %v1078 = vrot.slane %v895, %v1077
        %v1079 = vlaneseq
        %v1080 = vshrl.u32 %v1079, 7
        %v1081 = vsub.s32 0, %v1080
        %v1082 = vrot.slane %v896, %v1081
        %v1083 = vlaneseq
        %v1084 = vshrl.u32 %v1083, 7
        %v1085 = vsub.s32 0, %v1084
        %v1086 = vrot.slane %v897, %v1085
        %v1087 = vlaneseq
        %v1088 = vshrl.u32 %v1087, 7
        %v1089 = vsub.s32 0, %v1088
        %v1090 = vrot.slane %v898, %v1089
        %vm1091 = vcmp.eq.s32.totalorder %v1029, %v1078
        %vm1092 = vcmp.eq.s32.totalorder %v1032, %v1078
        %vm1093 = vcmp.eq.s32.totalorder %v1035, %v1078
        %vm1094 = vcmp.eq.s32.totalorder %v1038, %v1078
        %vm1095 = vcmp.eq.s32.totalorder %v1041, %v1082
        %vm1096 = vcmp.eq.s32.totalorder %v1044, %v1082
        %vm1097 = vcmp.eq.s32.totalorder %v1047, %v1082
        %vm1098 = vcmp.eq.s32.totalorder %v1050, %v1082
        %vm1099 = vcmp.eq.s32.totalorder %v1053, %v1086
        %vm1100 = vcmp.eq.s32.totalorder %v1056, %v1086
        %vm1101 = vcmp.eq.s32.totalorder %v1059, %v1086
        %vm1102 = vcmp.eq.s32.totalorder %v1062, %v1086
        %vm1103 = vcmp.eq.s32.totalorder %v1065, %v1090
        %vm1104 = vcmp.eq.s32.totalorder %v1068, %v1090
        %vm1105 = vcmp.eq.s32.totalorder %v1071, %v1090
        %vm1106 = vcmp.eq.s32.totalorder %v1074, %v1090
        %v1107 = vsel %vm1091, 1, 0
        %v1108 = vsel %vm1092, 1, 0
        %v1109 = vsel %vm1093, 1, 0
        %v1110 = vsel %vm1094, 1, 0
        %v1111 = vsel %vm1095, 1, 0
        %v1112 = vsel %vm1096, 1, 0
        %v1113 = vsel %vm1097, 1, 0
        %v1114 = vsel %vm1098, 1, 0
        %v1115 = vsel %vm1099, 1, 0
        %v1116 = vsel %vm1100, 1, 0
        %v1117 = vsel %vm1101, 1, 0
        %v1118 = vsel %vm1102, 1, 0
        %v1119 = vsel %vm1103, 1, 0
        %v1120 = vsel %vm1104, 1, 0
        %v1121 = vsel %vm1105, 1, 0
        %v1122 = vsel %vm1106, 1, 0
        %v1123 = vcvt.s32.f32 %v1107
        %v1124 = vcvt.s32.f32 %v1108
        %v1125 = vcvt.s32.f32 %v1109
        %v1126 = vcvt.s32.f32 %v1110
        %v1127 = vcvt.s32.f32 %v1111
        %v1128 = vcvt.s32.f32 %v1112
        %v1129 = vcvt.s32.f32 %v1113
        %v1130 = vcvt.s32.f32 %v1114
        %v1131 = vcvt.s32.f32 %v1115
        %v1132 = vcvt.s32.f32 %v1116
        %v1133 = vcvt.s32.f32 %v1117
        %v1134 = vcvt.s32.f32 %v1118
        %v1135 = vcvt.s32.f32 %v1119
        %v1136 = vcvt.s32.f32 %v1120
        %v1137 = vcvt.s32.f32 %v1121
        %v1138 = vcvt.s32.f32 %v1122
        %vm1139 = vcmask 261120
        %v1140 = vsel %vm1139, %v1123, 0.0
        %v1141 = vsel %vm1139, %v1124, 0.0
        %v1142 = vadd.f32 %v1140, %v1141
        %v1143 = vsel %vm1139, %v1125, 0.0
        %v1144 = vadd.f32 %v1142, %v1143
        %v1145 = vsel %vm1139, %v1126, 0.0
        %v1146 = vadd.f32 %v1144, %v1145
        %v1147 = vrot.slane %v1146, 4
        %v1148 = vadd.f32 %v1146, %v1147
        %v1149 = vrot.slane %v1148, 2
        %v1150 = vadd.f32 %v1148, %v1149
        %v1151 = vrot.slane %v1150, 1
        %v1152 = vadd.f32 %v1150, %v1151
        %v1153 = vsel %vm1139, %v1127, 0.0
        %v1154 = vsel %vm1139, %v1128, 0.0
        %v1155 = vadd.f32 %v1153, %v1154
        %v1156 = vsel %vm1139, %v1129, 0.0
        %v1157 = vadd.f32 %v1155, %v1156
        %v1158 = vsel %vm1139, %v1130, 0.0
        %v1159 = vadd.f32 %v1157, %v1158
        %v1160 = vrot.slane %v1159, 4
        %v1161 = vadd.f32 %v1159, %v1160
        %v1162 = vrot.slane %v1161, 2
        %v1163 = vadd.f32 %v1161, %v1162
        %v1164 = vrot.slane %v1163, 1
        %v1165 = vadd.f32 %v1163, %v1164
        %v1166 = vsel %vm1139, %v1131, 0.0
        %v1167 = vsel %vm1139, %v1132, 0.0
        %v1168 = vadd.f32 %v1166, %v1167
        %v1169 = vsel %vm1139, %v1133, 0.0
        %v1170 = vadd.f32 %v1168, %v1169
        %v1171 = vsel %vm1139, %v1134, 0.0
        %v1172 = vadd.f32 %v1170, %v1171
        %v1173 = vrot.slane %v1172, 4
        %v1174 = vadd.f32 %v1172, %v1173
        %v1175 = vrot.slane %v1174, 2
        %v1176 = vadd.f32 %v1174, %v1175
        %v1177 = vrot.slane %v1176, 1
        %v1178 = vadd.f32 %v1176, %v1177
        %v1179 = vsel %vm1139, %v1135, 0.0
        %v1180 = vsel %vm1139, %v1136, 0.0
        %v1181 = vadd.f32 %v1179, %v1180
        %v1182 = vsel %vm1139, %v1137, 0.0
        %v1183 = vadd.f32 %v1181, %v1182
        %v1184 = vsel %vm1139, %v1138, 0.0
        %v1185 = vadd.f32 %v1183, %v1184
        %v1186 = vrot.slane %v1185, 4
        %v1187 = vadd.f32 %v1185, %v1186
        %v1188 = vrot.slane %v1187, 2
        %v1189 = vadd.f32 %v1187, %v1188
        %v1190 = vrot.slane %v1189, 1
        %v1191 = vadd.f32 %v1189, %v1190
        %v1192 = vrcp.pop 32.0
        %v1193 = vmul.f32 %v1152, %v1192
        %v1194 = vmul.f32 %v1165, %v1192
        %v1195 = vmul.f32 %v1178, %v1192
        %v1196 = vmul.f32 %v1191, %v1192
        %v1197 = vsub.f32 %v1123, %v1193
        %v1198 = vsub.f32 %v1124, %v1193
        %v1199 = vsub.f32 %v1125, %v1193
        %v1200 = vsub.f32 %v1126, %v1193
        %v1201 = vsub.f32 %v1127, %v1194
        %v1202 = vsub.f32 %v1128, %v1194
        %v1203 = vsub.f32 %v1129, %v1194
        %v1204 = vsub.f32 %v1130, %v1194
        %v1205 = vsub.f32 %v1131, %v1195
        %v1206 = vsub.f32 %v1132, %v1195
        %v1207 = vsub.f32 %v1133, %v1195
        %v1208 = vsub.f32 %v1134, %v1195
        %v1209 = vsub.f32 %v1135, %v1196
        %v1210 = vsub.f32 %v1136, %v1196
        %v1211 = vsub.f32 %v1137, %v1196
        %v1212 = vsub.f32 %v1138, %v1196
        %v1213 = vsel %vm1139, %v864, 0.0
        %1214 = vadd.xlane.f32.xlu0 %v1213
        %v1215 = vpop.xlane.xlu0 %1214
        %v1216 = vsel %vm1139, %v866, 0.0
        %1217 = vadd.xlane.f32.xlu0 %v1216
        %v1218 = vpop.xlane.xlu0 %1217
        %v1219 = vsel %vm1139, %v868, 0.0
        %1220 = vadd.xlane.f32.xlu0 %v1219
        %v1221 = vpop.xlane.xlu0 %1220
        %v1222 = vsel %vm1139, %v870, 0.0
        %1223 = vadd.xlane.f32.xlu0 %v1222
        %v1224 = vpop.xlane.xlu0 %1223
        %v1225 = vsel %vm1139, %v872, 0.0
        %1226 = vadd.xlane.f32.xlu0 %v1225
        %v1227 = vpop.xlane.xlu0 %1226
        %v1228 = vsel %vm1139, %v874, 0.0
        %1229 = vadd.xlane.f32.xlu0 %v1228
        %v1230 = vpop.xlane.xlu0 %1229
        %v1231 = vsel %vm1139, %v876, 0.0
        %1232 = vadd.xlane.f32.xlu0 %v1231
        %v1233 = vpop.xlane.xlu0 %1232
        %v1234 = vsel %vm1139, %v878, 0.0
        %1235 = vadd.xlane.f32.xlu0 %v1234
        %v1236 = vpop.xlane.xlu0 %1235
        %v1237 = vsel %vm1139, %v880, 0.0
        %1238 = vadd.xlane.f32.xlu0 %v1237
        %v1239 = vpop.xlane.xlu0 %1238
        %v1240 = vsel %vm1139, %v882, 0.0
        %1241 = vadd.xlane.f32.xlu0 %v1240
        %v1242 = vpop.xlane.xlu0 %1241
        %v1243 = vsel %vm1139, %v884, 0.0
        %1244 = vadd.xlane.f32.xlu0 %v1243
        %v1245 = vpop.xlane.xlu0 %1244
        %v1246 = vsel %vm1139, %v886, 0.0
        %1247 = vadd.xlane.f32.xlu0 %v1246
        %v1248 = vpop.xlane.xlu0 %1247
        %v1249 = vsel %vm1139, %v888, 0.0
        %1250 = vadd.xlane.f32.xlu0 %v1249
        %v1251 = vpop.xlane.xlu0 %1250
        %v1252 = vsel %vm1139, %v890, 0.0
        %1253 = vadd.xlane.f32.xlu0 %v1252
        %v1254 = vpop.xlane.xlu0 %1253
        %v1255 = vsel %vm1139, %v892, 0.0
        %1256 = vadd.xlane.f32.xlu0 %v1255
        %v1257 = vpop.xlane.xlu0 %1256
        %v1258 = vsel %vm1139, %v894, 0.0
        %1259 = vadd.xlane.f32.xlu0 %v1258
        %v1260 = vpop.xlane.xlu0 %1259
        %v1261 = vmul.f32 %v1215, %v1192
        %v1262 = vmul.f32 %v1218, %v1192
        %v1263 = vmul.f32 %v1221, %v1192
        %v1264 = vmul.f32 %v1224, %v1192
        %v1265 = vmul.f32 %v1227, %v1192
        %v1266 = vmul.f32 %v1230, %v1192
        %v1267 = vmul.f32 %v1233, %v1192
        %v1268 = vmul.f32 %v1236, %v1192
        %v1269 = vmul.f32 %v1239, %v1192
        %v1270 = vmul.f32 %v1242, %v1192
        %v1271 = vmul.f32 %v1245, %v1192
        %v1272 = vmul.f32 %v1248, %v1192
        %v1273 = vmul.f32 %v1251, %v1192
        %v1274 = vmul.f32 %v1254, %v1192
        %v1275 = vmul.f32 %v1257, %v1192
        %v1276 = vmul.f32 %v1260, %v1192
        %v1277 = vsub.f32 %v864, %v1261
        %v1278 = vsub.f32 %v866, %v1262
        %v1279 = vsub.f32 %v868, %v1263
        %v1280 = vsub.f32 %v870, %v1264
        %v1281 = vsub.f32 %v872, %v1265
        %v1282 = vsub.f32 %v874, %v1266
        %v1283 = vsub.f32 %v876, %v1267
        %v1284 = vsub.f32 %v878, %v1268
        %v1285 = vsub.f32 %v880, %v1269
        %v1286 = vsub.f32 %v882, %v1270
        %v1287 = vsub.f32 %v884, %v1271
        %v1288 = vsub.f32 %v886, %v1272
        %v1289 = vsub.f32 %v888, %v1273
        %v1290 = vsub.f32 %v890, %v1274
        %v1291 = vsub.f32 %v892, %v1275
        %v1292 = vsub.f32 %v894, %v1276
        %v1293 = vmul.f32 %v1277, %v1197
        %v1294 = vmul.f32 %v1278, %v1198
        %v1295 = vmul.f32 %v1279, %v1199
        %v1296 = vmul.f32 %v1280, %v1200
        %v1297 = vmul.f32 %v1281, %v1201
        %v1298 = vmul.f32 %v1282, %v1202
        %v1299 = vmul.f32 %v1283, %v1203
        %v1300 = vmul.f32 %v1284, %v1204
        %v1301 = vmul.f32 %v1285, %v1205
        %v1302 = vmul.f32 %v1286, %v1206
        %v1303 = vmul.f32 %v1287, %v1207
        %v1304 = vmul.f32 %v1288, %v1208
        %v1305 = vmul.f32 %v1289, %v1209
        %v1306 = vmul.f32 %v1290, %v1210
        %v1307 = vmul.f32 %v1291, %v1211
        %v1308 = vmul.f32 %v1292, %v1212
        %v1309 = vsel %vm1139, %v1293, 0.0
        %1310 = vadd.xlane.f32.xlu0 %v1309
        %v1311 = vpop.xlane.xlu0 %1310
        %v1312 = vsel %vm1139, %v1294, 0.0
        %1313 = vadd.xlane.f32.xlu0 %v1312
        %v1314 = vpop.xlane.xlu0 %1313
        %v1315 = vsel %vm1139, %v1295, 0.0
        %1316 = vadd.xlane.f32.xlu0 %v1315
        %v1317 = vpop.xlane.xlu0 %1316
        %v1318 = vsel %vm1139, %v1296, 0.0
        %1319 = vadd.xlane.f32.xlu0 %v1318
        %v1320 = vpop.xlane.xlu0 %1319
        %v1321 = vsel %vm1139, %v1297, 0.0
        %1322 = vadd.xlane.f32.xlu0 %v1321
        %v1323 = vpop.xlane.xlu0 %1322
        %v1324 = vsel %vm1139, %v1298, 0.0
        %1325 = vadd.xlane.f32.xlu0 %v1324
        %v1326 = vpop.xlane.xlu0 %1325
        %v1327 = vsel %vm1139, %v1299, 0.0
        %1328 = vadd.xlane.f32.xlu0 %v1327
        %v1329 = vpop.xlane.xlu0 %1328
        %v1330 = vsel %vm1139, %v1300, 0.0
        %1331 = vadd.xlane.f32.xlu0 %v1330
        %v1332 = vpop.xlane.xlu0 %1331
        %v1333 = vsel %vm1139, %v1301, 0.0
        %1334 = vadd.xlane.f32.xlu0 %v1333
        %v1335 = vpop.xlane.xlu0 %1334
        %v1336 = vsel %vm1139, %v1302, 0.0
        %1337 = vadd.xlane.f32.xlu0 %v1336
        %v1338 = vpop.xlane.xlu0 %1337
        %v1339 = vsel %vm1139, %v1303, 0.0
        %1340 = vadd.xlane.f32.xlu0 %v1339
        %v1341 = vpop.xlane.xlu0 %1340
        %v1342 = vsel %vm1139, %v1304, 0.0
        %1343 = vadd.xlane.f32.xlu0 %v1342
        %v1344 = vpop.xlane.xlu0 %1343
        %v1345 = vsel %vm1139, %v1305, 0.0
        %1346 = vadd.xlane.f32.xlu0 %v1345
        %v1347 = vpop.xlane.xlu0 %1346
        %v1348 = vsel %vm1139, %v1306, 0.0
        %1349 = vadd.xlane.f32.xlu0 %v1348
        %v1350 = vpop.xlane.xlu0 %1349
        %v1351 = vsel %vm1139, %v1307, 0.0
        %1352 = vadd.xlane.f32.xlu0 %v1351
        %v1353 = vpop.xlane.xlu0 %1352
        %v1354 = vsel %vm1139, %v1308, 0.0
        %1355 = vadd.xlane.f32.xlu0 %v1354
        %v1356 = vpop.xlane.xlu0 %1355
        %v1373 = vlaneseq
        %v1374 = vand.u32 %v1373, 127
        %v1375 = vlaneseq
        %v1376 = vshrl.u32 %v1375, 7
        %v1377 = vsub.s32 %v1374, %v1376
        %v1378 = vrot.slane %v1311, %v1377
        %v1379 = vadd.s32 %v1374, 4294967288
        %v1380 = vlaneseq
        %v1381 = vshrl.u32 %v1380, 7
        %v1382 = vsub.s32 %v1379, %v1381
        %v1383 = vrot.slane %v1314, %v1382
        %vm1384 = vcmask 130112
        %v1385 = vsel %vm1384, %v1383, %v1378
        %v1386 = vadd.s32 %v1374, 4294967280
        %v1387 = vlaneseq
        %v1388 = vshrl.u32 %v1387, 7
        %v1389 = vsub.s32 %v1386, %v1388
        %v1390 = vrot.slane %v1317, %v1389
        %vm1391 = vcmask 195712
        %v1392 = vsel %vm1391, %v1390, %v1385
        %v1393 = vadd.s32 %v1374, 4294967272
        %v1394 = vlaneseq
        %v1395 = vshrl.u32 %v1394, 7
        %v1396 = vsub.s32 %v1393, %v1395
        %v1397 = vrot.slane %v1320, %v1396
        %vm1398 = vcmask 261312
        %v1399 = vsel %vm1398, %v1397, %v1392
        %v1400 = vlaneseq
        %v1401 = vshrl.u32 %v1400, 7
        %v1402 = vsub.s32 %v1374, %v1401
        %v1403 = vrot.slane %v1323, %v1402
        %v1404 = vlaneseq
        %v1405 = vshrl.u32 %v1404, 7
        %v1406 = vsub.s32 %v1379, %v1405
        %v1407 = vrot.slane %v1326, %v1406
        %v1408 = vsel %vm1384, %v1407, %v1403
        %v1409 = vlaneseq
        %v1410 = vshrl.u32 %v1409, 7
        %v1411 = vsub.s32 %v1386, %v1410
        %v1412 = vrot.slane %v1329, %v1411
        %v1413 = vsel %vm1391, %v1412, %v1408
        %v1414 = vlaneseq
        %v1415 = vshrl.u32 %v1414, 7
        %v1416 = vsub.s32 %v1393, %v1415
        %v1417 = vrot.slane %v1332, %v1416
        %v1418 = vsel %vm1398, %v1417, %v1413
        %v1419 = vlaneseq
        %v1420 = vshrl.u32 %v1419, 7
        %v1421 = vsub.s32 %v1374, %v1420
        %v1422 = vrot.slane %v1335, %v1421
        %v1423 = vlaneseq
        %v1424 = vshrl.u32 %v1423, 7
        %v1425 = vsub.s32 %v1379, %v1424
        %v1426 = vrot.slane %v1338, %v1425
        %v1427 = vsel %vm1384, %v1426, %v1422
        %v1428 = vlaneseq
        %v1429 = vshrl.u32 %v1428, 7
        %v1430 = vsub.s32 %v1386, %v1429
        %v1431 = vrot.slane %v1341, %v1430
        %v1432 = vsel %vm1391, %v1431, %v1427
        %v1433 = vlaneseq
        %v1434 = vshrl.u32 %v1433, 7
        %v1435 = vsub.s32 %v1393, %v1434
        %v1436 = vrot.slane %v1344, %v1435
        %v1437 = vsel %vm1398, %v1436, %v1432
        %v1438 = vlaneseq
        %v1439 = vshrl.u32 %v1438, 7
        %v1440 = vsub.s32 %v1374, %v1439
        %v1441 = vrot.slane %v1347, %v1440
        %v1442 = vlaneseq
        %v1443 = vshrl.u32 %v1442, 7
        %v1444 = vsub.s32 %v1379, %v1443
        %v1445 = vrot.slane %v1350, %v1444
        %v1446 = vsel %vm1384, %v1445, %v1441
        %v1447 = vlaneseq
        %v1448 = vshrl.u32 %v1447, 7
        %v1449 = vsub.s32 %v1386, %v1448
        %v1450 = vrot.slane %v1353, %v1449
        %v1451 = vsel %vm1391, %v1450, %v1446
        %v1452 = vlaneseq
        %v1453 = vshrl.u32 %v1452, 7
        %v1454 = vsub.s32 %v1393, %v1453
        %v1455 = vrot.slane %v1356, %v1454
        %v1456 = vsel %vm1398, %v1455, %v1451
        %vm1457 = vcmask 1041409
        %v1458 = vsel %vm1457, %v1418, %v1399
        %vm1459 = vcmask 1042434
        %v1460 = vsel %vm1459, %v1437, %v1458
        %vm1461 = vcmask 1043459
        %v1462 = vsel %vm1461, %v1456, %v1460
        %vm1464 = vcmask 257024
        %v1465 = vsel %vm1464, %v1462, 0.0
        %1466 = vadd.xlane.f32.xlu0 %v1465
        %v1467 = vpop.xlane.xlu0 %1466
        %v1468 = vsub.f32 0.0, %v1467
        %1469 = vst [vmem:[%s155] sm:$0xf] %v1468
        %s1470 = sand.u32 %s78, 1
        %s1471 = scalar_lea.sflag [#allocation5], %s1470
        %s1472 = sand.u32 %s78, 1
        %s1473 = smul.addr %s1472, 4
        %s1474 = scalar_lea.vmem [#allocation4], %s1473
        // Predicated region
        $region29: #{tpu_custom_call.1} parent=27 // pred_check
          %p1475 = pneg %p88
        $region30: #{tpu_custom_call.1} parent=27 // pred_check_branch
          %1477 = sbr.rel (%p1475) target = $region32
        $region31: #{tpu_custom_call.1} parent=27 // pred_region
          %s1479 = ssub.s32 64, 64
          %1480 = vsyncadd %s1471, %s1479
          %s1481 = smul.addr %s18, 64
          %s1482 = scalar_lea.hbm %s3, %s1481
          %s1484 = sshll.u32 %s1474, 4
          %s1485 = int_to_ptr.vmem [resolvable:$true] %s1484
          %1487 = dma.vmem_to_hbm [thread:$0]  %s1485, 64, %s1482, %s1471
        $region32: #{tpu_custom_call.1} parent=27 // pred_fallthru
          _
      $region28: #{tpu_custom_call.1} parent=5 // pred_fallthru
        _
      %p1488 = scmp.le.s32.totalorder 2, %s13
      // Predicated region
      $region33: #{tpu_custom_call.1} parent=5 // pred_check
        %p1489 = pneg %p1488
      $region34: #{tpu_custom_call.1} parent=5 // pred_check_branch
        %1491 = sbr.rel (%p1489) target = $region36
      $region35: #{tpu_custom_call.1} parent=5 // pred_region
        %s1492 = ssub.s32 %s13, 2
        // Predicated region
        $region37: #{tpu_custom_call.1} parent=35 // pred_check
          %p1493 = pneg %p94
        $region38: #{tpu_custom_call.1} parent=35 // pred_check_branch
          %1495 = sbr.rel (%p1493) target = $region40
        $region39: #{tpu_custom_call.1} parent=35 // pred_region
          %s1496 = sand.u32 %s79, 1
          %s1497 = scalar_lea.sflag [#allocation5], %s1496
          %s1498 = sand.u32 %s79, 1
          %s1499 = smul.addr %s1498, 4
          %s1500 = scalar_lea.vmem [#allocation4], %s1499
          %1501 = dma.done %s1497, 64
        $region40: #{tpu_custom_call.1} parent=35 // pred_fallthru
          _
      $region36: #{tpu_custom_call.1} parent=5 // pred_fallthru
        _
    $region6: #{tpu_custom_call.1} parent=1 // loop_footer
      %s17 = sadd.s32 1, %s13
    $region7: #{tpu_custom_call.1} parent=1 // loop_footer_branch
      %12 = sbr.rel target = $region3
    $region8: #{tpu_custom_call.1} parent=1 // loop_exit
      _
    %1502 = vsyncpa [#allocation5], 1
    %s1503 = scalar_lea.sflag [#allocation5], 1
    %1504 = vsyncpa %s1503, 1

</llo_original>
